<compile_context>
chip_gen: v7x
topology: tpu7x:2x2x1
jax: 0.10.0
libtpu: 0.0.40
codegen_flags: <defaults>
</compile_context>

<pallas_src>
import functools
import math

import jax
import jax.numpy as jnp
from jax.experimental import pallas as pl
from jax.experimental.pallas import tpu as pltpu


def _round_up(v, m):
    return ((v + m - 1) // m) * m


def _layernorm(x, g, b, eps=1e-5):
    mu = jnp.mean(x, axis=-1, keepdims=True)
    var = jnp.mean((x - mu) ** 2, axis=-1, keepdims=True)
    return (x - mu) * jax.lax.rsqrt(var + eps) * g + b


# ---------------------------------------------------------------- kernel -----

def _vit_fused_kernel(patches_ref, wproj_ref, addvec_ref,
                      ln1g_ref, ln1b_ref,
                      wqkv_ref, bqkv_ref, wo_ref, bo_ref,
                      ln2g_ref, ln2b_ref,
                      w1_ref, b1_ref, w2_ref, b2_ref,
                      postg_ref, postb_ref, headw_ref, headb_ref,
                      o_ref, *, seq_len, num_heads):
    f32, bf16 = jnp.float32, jnp.bfloat16
    Lp = patches_ref.shape[1]
    D = wproj_ref.shape[1]
    H = num_heads
    dh = D // H

    # ---- patch projection (conv as matmul); cls/pos/conv-bias in addvec ------
    x = (jnp.dot(patches_ref[0], wproj_ref[...], preferred_element_type=f32)
         + addvec_ref[...])                                    # (Lp, D) f32

    # ---- pre-LN multi-head self-attention (fused QKV, dh contraction) --------
    h = _layernorm(x, ln1g_ref[...], ln1b_ref[...])
    qkv = (jnp.dot(h.astype(bf16), wqkv_ref[...], preferred_element_type=f32)
           + bqkv_ref[...])                                    # (Lp, 3D) f32
    q, k, v = qkv[:, :D], qkv[:, D:2 * D], qkv[:, 2 * D:]      # D-aligned slices

    def split_heads(t):                                        # (Lp, D) -> (H, Lp, dh)
        return jnp.stack([t[:, i * dh:(i + 1) * dh] for i in range(H)],
                         axis=0).astype(bf16)

    qh, kh, vh = split_heads(q), split_heads(k), split_heads(v)

    # 1/sqrt(dh) is pre-folded into the q columns of wqkv/bqkv (wrapper).
    s = jnp.einsum('hqd,hkd->hqk', qh, kh, preferred_element_type=f32)
    key_idx = jax.lax.broadcasted_iota(jnp.int32, (1, 1, Lp), 2)
    s = jnp.where(key_idx < seq_len, s, -1e30)                 # mask padded keys
    s_max = jnp.max(s, axis=-1, keepdims=True)
    e = jnp.exp(s - s_max)
    p = e * pl.reciprocal(jnp.sum(e, axis=-1, keepdims=True), approx=True)
    ctx = jnp.einsum('hqk,hkd->hqd', p.astype(bf16), vh,
                     preferred_element_type=f32)               # (H, Lp, dh) f32
    attn = jnp.concatenate([ctx[i] for i in range(H)], axis=-1)  # (Lp, D)

    x = x + (jnp.dot(attn.astype(bf16), wo_ref[...], preferred_element_type=f32)
             + bo_ref[...])

    # ---- pre-LN MLP -----------------------------------------------------------
    h2 = _layernorm(x, ln2g_ref[...], ln2b_ref[...])
    m = (jnp.dot(h2.astype(bf16), w1_ref[...], preferred_element_type=f32)
         + b1_ref[...])
    # TODO(synk): PyTorch nn.GELU defaults to the exact erf form; tanh approx used.
    m = jax.nn.gelu(m, approximate=True)
    x = x + (jnp.dot(m.astype(bf16), w2_ref[...], preferred_element_type=f32)
             + b2_ref[...])

    # ---- post_norm + classifier head on the cls row only ----------------------
    cls = x[0:1, :]                                            # (1, D)
    hc = _layernorm(cls, postg_ref[...], postb_ref[...])
    logits = (jnp.dot(hc.astype(bf16), headw_ref[...], preferred_element_type=f32)
              + headb_ref[...])                                # (1, NPAD)
    o_ref[...] = logits[None]                                  # (1, 1, NPAD)


# --------------------------------------------------------------- wrapper -----

def vit_forward(x, conv_w, conv_b, cls_token, pos_emb, tparams,
                post_g, post_b, head_w, head_b, *, num_heads):
    B, C, Himg, Wimg = x.shape
    D, _, P, _ = conv_w.shape
    Hp, Wp = Himg // P, Wimg // P
    N = Hp * Wp
    L = N + 1
    # lane-dense at real sizes (L>64 -> multiple of 128), sublane-aligned otherwise
    Lp = _round_up(L, 128) if L > 64 else _round_up(L, 8)
    CPP = C * P * P
    NCLS = head_w.shape[1]
    NPAD = _round_up(NCLS, 128)
    MLP = tparams["w1"].shape[1]
    assert D % num_heads == 0
    dh = D // num_heads
    f32, bf16 = jnp.float32, jnp.bfloat16

    # --- im2col (layout only): Conv2d(k=stride=P) == matmul on flat patches ---
    patches = (x.reshape(B, C, Hp, P, Wp, P)
                .transpose(0, 2, 4, 1, 3, 5)
                .reshape(B, N, CPP))
    # row 0 (cls) and rows >= L (seq padding) are zero; their embeddings / the
    # conv bias / pos_emb come from addvec inside the kernel.
    patches_full = (jnp.zeros((B, Lp, CPP), f32)
                    .at[:, 1:L, :].set(patches).astype(bf16))

    w_proj = conv_w.reshape(D, CPP).T.astype(bf16)             # (CPP, D)

    # additive vector (Lp, D); broadcast over batch by the grid, NOT tiled in HBM.
    # TODO(synk): training-mode Dropout(dp_rate) RNG not reproduced (eval mode).
    pos2d = pos_emb[:, 0, :]                                   # (L, D)
    add = pos2d + conv_b[None, :]
    add = add.at[0].set(pos2d[0] + cls_token)
    addvec = jnp.zeros((Lp, D), f32).at[:L, :].set(add)

    # fused QKV weight; fold 1/sqrt(dh) into the q columns (parameter prep)
    qscale = 1.0 / math.sqrt(dh)
    wqkv = tparams["wqkv"].at[:, :D].multiply(qscale).astype(bf16)
    bqkv = tparams["bqkv"].at[:, :D].multiply(qscale)

    # classifier head padded to a lane-dense 128-wide output
    head_w_p = jnp.zeros((D, NPAD), f32).at[:, :NCLS].set(head_w).astype(bf16)
    head_b_p = jnp.zeros((1, NPAD), f32).at[0, :NCLS].set(head_b)

    weights = [
        w_proj, addvec,
        tparams["ln1_g"], tparams["ln1_b"],
        wqkv, bqkv,
        tparams["wo"].astype(bf16), tparams["bo"],
        tparams["ln2_g"], tparams["ln2_b"],
        tparams["w1"].astype(bf16), tparams["b1"],
        tparams["w2"].astype(bf16), tparams["b2"],
        post_g, post_b, head_w_p, head_b_p,
    ]

    # batch-tiled grid: one image per step; weights have constant index_maps so
    # they stay VMEM-resident across iterations, patch/output tiles pipeline.
    in_specs = [pl.BlockSpec((1, Lp, CPP), lambda b: (b, 0, 0))]
    in_specs += [pl.BlockSpec(w.shape, lambda b, _n=w.ndim: (0,) * _n)
                 for w in weights]

    flops = 2 * B * (Lp * CPP * D + Lp * D * 3 * D + 2 * Lp * Lp * D
                     + Lp * D * D + 2 * Lp * D * MLP + D * NPAD)
    transcendentals = B * (num_heads * Lp * Lp + Lp * MLP)
    bytes_accessed = (patches_full.size * patches_full.dtype.itemsize
                      + sum(w.size * w.dtype.itemsize for w in weights)
                      + B * NPAD * 4)

    kernel = functools.partial(_vit_fused_kernel, seq_len=L, num_heads=num_heads)
    # TODO(synk): the injected `transformer` submodule is undefined in ViT.py;
    # a single standard pre-LN MHA+MLP encoder block is used as a stand-in.
    out = pl.pallas_call(
        kernel,
        out_shape=jax.ShapeDtypeStruct((B, 1, NPAD), f32),
        grid=(B,),
        in_specs=in_specs,
        out_specs=pl.BlockSpec((1, 1, NPAD), lambda b: (b, 0, 0)),
        compiler_params=pltpu.CompilerParams(
            dimension_semantics=("parallel",),       # shards batch on v7x's 2 TCs
            vmem_limit_bytes=48 * 1024 * 1024),      # > 32 MiB default, v7x-safe
        cost_estimate=pl.CostEstimate(flops=flops,
                                      transcendentals=transcendentals,
                                      bytes_accessed=bytes_accessed),
    )(patches_full, *weights)

    # cls logits, real class columns
    return out[:, 0, :NCLS]


# ------------------------------------------------------------------ main -----

if __name__ == "__main__":
    B, C_IN, IMG, P = 2, 3, 16, 4
    D, NH, NCLS = 32, 4, 10
    N = (IMG // P) ** 2
    L = N + 1
    MLP = 4 * D

    key = jax.random.PRNGKey(0)
    ks = jax.random.split(key, 10)
    scale = D ** (-0.5)

    conv_w = 0.02 * jax.random.normal(ks[0], (D, C_IN, P, P), jnp.float32)
    conv_b = jnp.zeros((D,), jnp.float32)
    cls_token = jnp.zeros((D,), jnp.float32)          # module inits to zeros
    pos_emb = scale * jax.random.normal(ks[1], (L, 1, D), jnp.float32)

    tparams = dict(
        ln1_g=jnp.ones((1, D), jnp.float32), ln1_b=jnp.zeros((1, D), jnp.float32),
        wqkv=0.02 * jax.random.normal(ks[2], (D, 3 * D), jnp.float32),
        bqkv=jnp.zeros((1, 3 * D), jnp.float32),
        wo=0.02 * jax.random.normal(ks[3], (D, D), jnp.float32),
        bo=jnp.zeros((1, D), jnp.float32),
        ln2_g=jnp.ones((1, D), jnp.float32), ln2_b=jnp.zeros((1, D), jnp.float32),
        w1=0.02 * jax.random.normal(ks[4], (D, MLP), jnp.float32),
        b1=jnp.zeros((1, MLP), jnp.float32),
        w2=0.02 * jax.random.normal(ks[5], (MLP, D), jnp.float32),
        b2=jnp.zeros((1, D), jnp.float32),
    )
    post_g = jnp.ones((1, D), jnp.float32)
    post_b = jnp.zeros((1, D), jnp.float32)
    head_w = 0.02 * jax.random.normal(ks[6], (D, NCLS), jnp.float32)
    head_b = jnp.zeros((NCLS,), jnp.float32)

    x = jax.random.normal(ks[7], (B, C_IN, IMG, IMG), jnp.float32)

    fwd = jax.jit(functools.partial(vit_forward, num_heads=NH))
    logits = fwd(x, conv_w, conv_b, cls_token, pos_emb, tparams,
                 post_g, post_b, head_w, head_b)
    jax.block_until_ready(logits)
    assert logits.shape == (B, NCLS) and logits.dtype == jnp.float32
    assert bool(jnp.all(jnp.isfinite(logits)))
    print("KERNEL_OK")
</pallas_src>

<mosaic_0001>
module attributes {stable_mosaic.version = 11 : i64} {
  func.func @_vit_fused_kernel(%arg0: i32, %arg1: memref<1x24x48xbf16, #tpu.memory_space<vmem>>, %arg2: memref<48x32xbf16, #tpu.memory_space<vmem>>, %arg3: memref<24x32xf32, #tpu.memory_space<vmem>>, %arg4: memref<1x32xf32, #tpu.memory_space<vmem>>, %arg5: memref<1x32xf32, #tpu.memory_space<vmem>>, %arg6: memref<32x96xbf16, #tpu.memory_space<vmem>>, %arg7: memref<1x96xf32, #tpu.memory_space<vmem>>, %arg8: memref<32x32xbf16, #tpu.memory_space<vmem>>, %arg9: memref<1x32xf32, #tpu.memory_space<vmem>>, %arg10: memref<1x32xf32, #tpu.memory_space<vmem>>, %arg11: memref<1x32xf32, #tpu.memory_space<vmem>>, %arg12: memref<32x128xbf16, #tpu.memory_space<vmem>>, %arg13: memref<1x128xf32, #tpu.memory_space<vmem>>, %arg14: memref<128x32xbf16, #tpu.memory_space<vmem>>, %arg15: memref<1x32xf32, #tpu.memory_space<vmem>>, %arg16: memref<1x32xf32, #tpu.memory_space<vmem>>, %arg17: memref<1x32xf32, #tpu.memory_space<vmem>>, %arg18: memref<32x128xbf16, #tpu.memory_space<vmem>>, %arg19: memref<1x128xf32, #tpu.memory_space<vmem>>, %arg20: memref<1x1x128xf32, #tpu.memory_space<vmem>>) attributes {dimension_semantics = [#tpu.dimension_semantics<parallel>], iteration_bounds = array<i64: 2>, scalar_prefetch = 0 : i64, scratch_operands = 0 : i64, tpu.core_type = #tpu.core_type<tc>, window_params = [{transform_indices = @transform_0, window_bounds = array<i64: 1, 24, 48>}, {pipeline_mode = #tpu.pipeline_mode<synchronous>, transform_indices = @transform_1, window_bounds = array<i64: 48, 32>}, {pipeline_mode = #tpu.pipeline_mode<synchronous>, transform_indices = @transform_2, window_bounds = array<i64: 24, 32>}, {pipeline_mode = #tpu.pipeline_mode<synchronous>, transform_indices = @transform_3, window_bounds = array<i64: 1, 32>}, {pipeline_mode = #tpu.pipeline_mode<synchronous>, transform_indices = @transform_4, window_bounds = array<i64: 1, 32>}, {pipeline_mode = #tpu.pipeline_mode<synchronous>, transform_indices = @transform_5, window_bounds = array<i64: 32, 96>}, {pipeline_mode = #tpu.pipeline_mode<synchronous>, transform_indices = @transform_6, window_bounds = array<i64: 1, 96>}, {pipeline_mode = #tpu.pipeline_mode<synchronous>, transform_indices = @transform_7, window_bounds = array<i64: 32, 32>}, {pipeline_mode = #tpu.pipeline_mode<synchronous>, transform_indices = @transform_8, window_bounds = array<i64: 1, 32>}, {pipeline_mode = #tpu.pipeline_mode<synchronous>, transform_indices = @transform_9, window_bounds = array<i64: 1, 32>}, {pipeline_mode = #tpu.pipeline_mode<synchronous>, transform_indices = @transform_10, window_bounds = array<i64: 1, 32>}, {pipeline_mode = #tpu.pipeline_mode<synchronous>, transform_indices = @transform_11, window_bounds = array<i64: 32, 128>}, {pipeline_mode = #tpu.pipeline_mode<synchronous>, transform_indices = @transform_12, window_bounds = array<i64: 1, 128>}, {pipeline_mode = #tpu.pipeline_mode<synchronous>, transform_indices = @transform_13, window_bounds = array<i64: 128, 32>}, {pipeline_mode = #tpu.pipeline_mode<synchronous>, transform_indices = @transform_14, window_bounds = array<i64: 1, 32>}, {pipeline_mode = #tpu.pipeline_mode<synchronous>, transform_indices = @transform_15, window_bounds = array<i64: 1, 32>}, {pipeline_mode = #tpu.pipeline_mode<synchronous>, transform_indices = @transform_16, window_bounds = array<i64: 1, 32>}, {pipeline_mode = #tpu.pipeline_mode<synchronous>, transform_indices = @transform_17, window_bounds = array<i64: 32, 128>}, {pipeline_mode = #tpu.pipeline_mode<synchronous>, transform_indices = @transform_18, window_bounds = array<i64: 1, 128>}, {transform_indices = @transform_19, window_bounds = array<i64: 1, 1, 128>}]} {
    %c0 = arith.constant 0 : index
    %c0_0 = arith.constant 0 : index
    %c0_1 = arith.constant 0 : index
    %0 = vector.load %arg1[%c0, %c0_0, %c0_1] : memref<1x24x48xbf16, #tpu.memory_space<vmem>>, vector<1x24x48xbf16>
    %1 = vector.shape_cast %0 : vector<1x24x48xbf16> to vector<24x48xbf16>
    %c0_2 = arith.constant 0 : index
    %c0_3 = arith.constant 0 : index
    %2 = vector.load %arg2[%c0_2, %c0_3] : memref<48x32xbf16, #tpu.memory_space<vmem>>, vector<48x32xbf16>
    %cst = arith.constant dense<0.000000e+00> : vector<24x32xf32>
    %3 = tpu.matmul %1, %2, %cst {dimension_numbers = #tpu.dot_dimension_numbers<[1], [0], [0], [1], [0, 0, 1, 1], [], []>} : vector<24x48xbf16>, vector<48x32xbf16>, vector<24x32xf32> -> vector<24x32xf32>
    %c0_4 = arith.constant 0 : index
    %c0_5 = arith.constant 0 : index
    %4 = vector.load %arg3[%c0_4, %c0_5] : memref<24x32xf32, #tpu.memory_space<vmem>>, vector<24x32xf32>
    %5 = arith.addf %3, %4 : vector<24x32xf32>
    %c0_6 = arith.constant 0 : index
    %c0_7 = arith.constant 0 : index
    %6 = vector.load %arg4[%c0_6, %c0_7] : memref<1x32xf32, #tpu.memory_space<vmem>>, vector<1x32xf32>
    %c0_8 = arith.constant 0 : index
    %c0_9 = arith.constant 0 : index
    %7 = vector.load %arg5[%c0_8, %c0_9] : memref<1x32xf32, #tpu.memory_space<vmem>>, vector<1x32xf32>
    %cst_10 = arith.constant dense<0.000000e+00> : vector<24xf32>
    %8 = vector.multi_reduction <add>, %5, %cst_10 [1] : vector<24x32xf32> to vector<24xf32>
    %9 = vector.shape_cast %8 : vector<24xf32> to vector<24x1xf32>
    %cst_11 = arith.constant 3.200000e+01 : f32
    %10 = vector.broadcast %cst_11 : f32 to vector<24x1xf32>
    %11 = arith.divf %9, %10 : vector<24x1xf32>
    %12 = vector.broadcast %11 : vector<24x1xf32> to vector<24x32xf32>
    %13 = arith.subf %5, %12 : vector<24x32xf32>
    %14 = arith.mulf %13, %13 : vector<24x32xf32>
    %cst_12 = arith.constant dense<0.000000e+00> : vector<24xf32>
    %15 = vector.multi_reduction <add>, %14, %cst_12 [1] : vector<24x32xf32> to vector<24xf32>
    %16 = vector.shape_cast %15 : vector<24xf32> to vector<24x1xf32>
    %cst_13 = arith.constant 3.200000e+01 : f32
    %17 = vector.broadcast %cst_13 : f32 to vector<24x1xf32>
    %18 = arith.divf %16, %17 : vector<24x1xf32>
    %19 = vector.broadcast %11 : vector<24x1xf32> to vector<24x32xf32>
    %20 = arith.subf %5, %19 : vector<24x32xf32>
    %cst_14 = arith.constant 9.99999974E-6 : f32
    %21 = vector.broadcast %cst_14 : f32 to vector<24x1xf32>
    %22 = arith.addf %18, %21 : vector<24x1xf32>
    %23 = math.rsqrt %22 : vector<24x1xf32>
    %24 = vector.broadcast %23 : vector<24x1xf32> to vector<24x32xf32>
    %25 = arith.mulf %20, %24 : vector<24x32xf32>
    %26 = vector.broadcast %6 : vector<1x32xf32> to vector<24x32xf32>
    %27 = arith.mulf %25, %26 : vector<24x32xf32>
    %28 = vector.broadcast %7 : vector<1x32xf32> to vector<24x32xf32>
    %29 = arith.addf %27, %28 : vector<24x32xf32>
    %30 = arith.truncf %29 : vector<24x32xf32> to vector<24x32xbf16>
    %c0_15 = arith.constant 0 : index
    %c0_16 = arith.constant 0 : index
    %31 = vector.load %arg6[%c0_15, %c0_16] : memref<32x96xbf16, #tpu.memory_space<vmem>>, vector<32x96xbf16>
    %cst_17 = arith.constant dense<0.000000e+00> : vector<24x96xf32>
    %32 = tpu.matmul %30, %31, %cst_17 {dimension_numbers = #tpu.dot_dimension_numbers<[1], [0], [0], [1], [0, 0, 1, 1], [], []>} : vector<24x32xbf16>, vector<32x96xbf16>, vector<24x96xf32> -> vector<24x96xf32>
    %c0_18 = arith.constant 0 : index
    %c0_19 = arith.constant 0 : index
    %33 = vector.load %arg7[%c0_18, %c0_19] : memref<1x96xf32, #tpu.memory_space<vmem>>, vector<1x96xf32>
    %34 = vector.broadcast %33 : vector<1x96xf32> to vector<24x96xf32>
    %35 = arith.addf %32, %34 : vector<24x96xf32>
    %36 = vector.extract_strided_slice %35 {offsets = [0, 0], sizes = [24, 32], strides = [1, 1]} : vector<24x96xf32> to vector<24x32xf32>
    %37 = vector.extract_strided_slice %35 {offsets = [0, 32], sizes = [24, 32], strides = [1, 1]} : vector<24x96xf32> to vector<24x32xf32>
    %38 = vector.extract_strided_slice %35 {offsets = [0, 64], sizes = [24, 32], strides = [1, 1]} : vector<24x96xf32> to vector<24x32xf32>
    %39 = vector.extract_strided_slice %36 {offsets = [0, 0], sizes = [24, 8], strides = [1, 1]} : vector<24x32xf32> to vector<24x8xf32>
    %40 = vector.extract_strided_slice %36 {offsets = [0, 8], sizes = [24, 8], strides = [1, 1]} : vector<24x32xf32> to vector<24x8xf32>
    %41 = vector.extract_strided_slice %36 {offsets = [0, 16], sizes = [24, 8], strides = [1, 1]} : vector<24x32xf32> to vector<24x8xf32>
    %42 = vector.extract_strided_slice %36 {offsets = [0, 24], sizes = [24, 8], strides = [1, 1]} : vector<24x32xf32> to vector<24x8xf32>
    %43 = vector.shape_cast %39 : vector<24x8xf32> to vector<1x24x8xf32>
    %44 = vector.shape_cast %40 : vector<24x8xf32> to vector<1x24x8xf32>
    %45 = vector.shape_cast %41 : vector<24x8xf32> to vector<1x24x8xf32>
    %46 = vector.shape_cast %42 : vector<24x8xf32> to vector<1x24x8xf32>
    %47 = tpu.concatenate %43, %44, %45, %46 in 0 : vector<1x24x8xf32>, vector<1x24x8xf32>, vector<1x24x8xf32>, vector<1x24x8xf32> -> vector<4x24x8xf32>
    %48 = arith.truncf %47 : vector<4x24x8xf32> to vector<4x24x8xbf16>
    %49 = vector.extract_strided_slice %37 {offsets = [0, 0], sizes = [24, 8], strides = [1, 1]} : vector<24x32xf32> to vector<24x8xf32>
    %50 = vector.extract_strided_slice %37 {offsets = [0, 8], sizes = [24, 8], strides = [1, 1]} : vector<24x32xf32> to vector<24x8xf32>
    %51 = vector.extract_strided_slice %37 {offsets = [0, 16], sizes = [24, 8], strides = [1, 1]} : vector<24x32xf32> to vector<24x8xf32>
    %52 = vector.extract_strided_slice %37 {offsets = [0, 24], sizes = [24, 8], strides = [1, 1]} : vector<24x32xf32> to vector<24x8xf32>
    %53 = vector.shape_cast %49 : vector<24x8xf32> to vector<1x24x8xf32>
    %54 = vector.shape_cast %50 : vector<24x8xf32> to vector<1x24x8xf32>
    %55 = vector.shape_cast %51 : vector<24x8xf32> to vector<1x24x8xf32>
    %56 = vector.shape_cast %52 : vector<24x8xf32> to vector<1x24x8xf32>
    %57 = tpu.concatenate %53, %54, %55, %56 in 0 : vector<1x24x8xf32>, vector<1x24x8xf32>, vector<1x24x8xf32>, vector<1x24x8xf32> -> vector<4x24x8xf32>
    %58 = arith.truncf %57 : vector<4x24x8xf32> to vector<4x24x8xbf16>
    %59 = vector.extract_strided_slice %38 {offsets = [0, 0], sizes = [24, 8], strides = [1, 1]} : vector<24x32xf32> to vector<24x8xf32>
    %60 = vector.extract_strided_slice %38 {offsets = [0, 8], sizes = [24, 8], strides = [1, 1]} : vector<24x32xf32> to vector<24x8xf32>
    %61 = vector.extract_strided_slice %38 {offsets = [0, 16], sizes = [24, 8], strides = [1, 1]} : vector<24x32xf32> to vector<24x8xf32>
    %62 = vector.extract_strided_slice %38 {offsets = [0, 24], sizes = [24, 8], strides = [1, 1]} : vector<24x32xf32> to vector<24x8xf32>
    %63 = vector.shape_cast %59 : vector<24x8xf32> to vector<1x24x8xf32>
    %64 = vector.shape_cast %60 : vector<24x8xf32> to vector<1x24x8xf32>
    %65 = vector.shape_cast %61 : vector<24x8xf32> to vector<1x24x8xf32>
    %66 = vector.shape_cast %62 : vector<24x8xf32> to vector<1x24x8xf32>
    %67 = tpu.concatenate %63, %64, %65, %66 in 0 : vector<1x24x8xf32>, vector<1x24x8xf32>, vector<1x24x8xf32>, vector<1x24x8xf32> -> vector<4x24x8xf32>
    %68 = arith.truncf %67 : vector<4x24x8xf32> to vector<4x24x8xbf16>
    "tpu.trace_start"() <{level = 10 : i32, message = "hqd,hkd->hqk"}> : () -> ()
    %cst_20 = arith.constant dense<0.000000e+00> : vector<4x24x24xf32>
    %69 = tpu.matmul %48, %58, %cst_20 {dimension_numbers = #tpu.dot_dimension_numbers<[2], [2], [1], [1], [0, 0, 0, 1, 1, 1], [0], [0]>} : vector<4x24x8xbf16>, vector<4x24x8xbf16>, vector<4x24x24xf32> -> vector<4x24x24xf32>
    "tpu.trace_stop"() : () -> ()
    %70 = tpu.iota {dimensions = array<i32: 2>} : vector<1x1x24xi32>
    %c17_i32 = arith.constant 17 : i32
    %71 = vector.broadcast %c17_i32 : i32 to vector<1x1x24xi32>
    %72 = arith.cmpi slt, %70, %71 : vector<1x1x24xi32>
    %cst_21 = arith.constant -1.000000e+30 : f32
    %73 = vector.shape_cast %72 : vector<1x1x24xi1> to vector<1x1x24xi1>
    %74 = vector.broadcast %73 : vector<1x1x24xi1> to vector<4x24x24xi1>
    %75 = vector.broadcast %cst_21 : f32 to vector<4x24x24xf32>
    %76 = arith.select %74, %69, %75 : vector<4x24x24xi1>, vector<4x24x24xf32>
    %cst_22 = arith.constant dense<0xFF800000> : vector<4x24xf32>
    %77 = vector.multi_reduction <maximumf>, %76, %cst_22 [2] : vector<4x24x24xf32> to vector<4x24xf32>
    %78 = vector.shape_cast %77 : vector<4x24xf32> to vector<4x24x1xf32>
    %79 = vector.broadcast %78 : vector<4x24x1xf32> to vector<4x24x24xf32>
    %80 = arith.subf %76, %79 : vector<4x24x24xf32>
    %81 = math.exp %80 : vector<4x24x24xf32>
    %cst_23 = arith.constant dense<0.000000e+00> : vector<4x24xf32>
    %82 = vector.multi_reduction <add>, %81, %cst_23 [2] : vector<4x24x24xf32> to vector<4x24xf32>
    %83 = vector.shape_cast %82 : vector<4x24xf32> to vector<4x24x1xf32>
    %84 = tpu.reciprocal %83 {approx = true} : vector<4x24x1xf32> -> vector<4x24x1xf32>
    %85 = vector.broadcast %84 : vector<4x24x1xf32> to vector<4x24x24xf32>
    %86 = arith.mulf %81, %85 : vector<4x24x24xf32>
    %87 = arith.truncf %86 : vector<4x24x24xf32> to vector<4x24x24xbf16>
    "tpu.trace_start"() <{level = 10 : i32, message = "hqk,hkd->hqd"}> : () -> ()
    %cst_24 = arith.constant dense<0.000000e+00> : vector<4x24x8xf32>
    %88 = tpu.matmul %87, %68, %cst_24 {dimension_numbers = #tpu.dot_dimension_numbers<[2], [1], [1], [2], [0, 0, 0, 1, 1, 2], [0], [0]>} : vector<4x24x24xbf16>, vector<4x24x8xbf16>, vector<4x24x8xf32> -> vector<4x24x8xf32>
    "tpu.trace_stop"() : () -> ()
    %89 = vector.extract_strided_slice %88 {offsets = [0, 0, 0], sizes = [1, 24, 8], strides = [1, 1, 1]} : vector<4x24x8xf32> to vector<1x24x8xf32>
    %90 = vector.shape_cast %89 : vector<1x24x8xf32> to vector<24x8xf32>
    %91 = vector.extract_strided_slice %88 {offsets = [1, 0, 0], sizes = [1, 24, 8], strides = [1, 1, 1]} : vector<4x24x8xf32> to vector<1x24x8xf32>
    %92 = vector.shape_cast %91 : vector<1x24x8xf32> to vector<24x8xf32>
    %93 = vector.extract_strided_slice %88 {offsets = [2, 0, 0], sizes = [1, 24, 8], strides = [1, 1, 1]} : vector<4x24x8xf32> to vector<1x24x8xf32>
    %94 = vector.shape_cast %93 : vector<1x24x8xf32> to vector<24x8xf32>
    %95 = vector.extract_strided_slice %88 {offsets = [3, 0, 0], sizes = [1, 24, 8], strides = [1, 1, 1]} : vector<4x24x8xf32> to vector<1x24x8xf32>
    %96 = vector.shape_cast %95 : vector<1x24x8xf32> to vector<24x8xf32>
    %97 = tpu.concatenate %90, %92, %94, %96 in 1 : vector<24x8xf32>, vector<24x8xf32>, vector<24x8xf32>, vector<24x8xf32> -> vector<24x32xf32>
    %98 = arith.truncf %97 : vector<24x32xf32> to vector<24x32xbf16>
    %c0_25 = arith.constant 0 : index
    %c0_26 = arith.constant 0 : index
    %99 = vector.load %arg8[%c0_25, %c0_26] : memref<32x32xbf16, #tpu.memory_space<vmem>>, vector<32x32xbf16>
    %cst_27 = arith.constant dense<0.000000e+00> : vector<24x32xf32>
    %100 = tpu.matmul %98, %99, %cst_27 {dimension_numbers = #tpu.dot_dimension_numbers<[1], [0], [0], [1], [0, 0, 1, 1], [], []>} : vector<24x32xbf16>, vector<32x32xbf16>, vector<24x32xf32> -> vector<24x32xf32>
    %c0_28 = arith.constant 0 : index
    %c0_29 = arith.constant 0 : index
    %101 = vector.load %arg9[%c0_28, %c0_29] : memref<1x32xf32, #tpu.memory_space<vmem>>, vector<1x32xf32>
    %102 = vector.broadcast %101 : vector<1x32xf32> to vector<24x32xf32>
    %103 = arith.addf %100, %102 : vector<24x32xf32>
    %104 = arith.addf %5, %103 : vector<24x32xf32>
    %c0_30 = arith.constant 0 : index
    %c0_31 = arith.constant 0 : index
    %105 = vector.load %arg10[%c0_30, %c0_31] : memref<1x32xf32, #tpu.memory_space<vmem>>, vector<1x32xf32>
    %c0_32 = arith.constant 0 : index
    %c0_33 = arith.constant 0 : index
    %106 = vector.load %arg11[%c0_32, %c0_33] : memref<1x32xf32, #tpu.memory_space<vmem>>, vector<1x32xf32>
    %cst_34 = arith.constant dense<0.000000e+00> : vector<24xf32>
    %107 = vector.multi_reduction <add>, %104, %cst_34 [1] : vector<24x32xf32> to vector<24xf32>
    %108 = vector.shape_cast %107 : vector<24xf32> to vector<24x1xf32>
    %cst_35 = arith.constant 3.200000e+01 : f32
    %109 = vector.broadcast %cst_35 : f32 to vector<24x1xf32>
    %110 = arith.divf %108, %109 : vector<24x1xf32>
    %111 = vector.broadcast %110 : vector<24x1xf32> to vector<24x32xf32>
    %112 = arith.subf %104, %111 : vector<24x32xf32>
    %113 = arith.mulf %112, %112 : vector<24x32xf32>
    %cst_36 = arith.constant dense<0.000000e+00> : vector<24xf32>
    %114 = vector.multi_reduction <add>, %113, %cst_36 [1] : vector<24x32xf32> to vector<24xf32>
    %115 = vector.shape_cast %114 : vector<24xf32> to vector<24x1xf32>
    %cst_37 = arith.constant 3.200000e+01 : f32
    %116 = vector.broadcast %cst_37 : f32 to vector<24x1xf32>
    %117 = arith.divf %115, %116 : vector<24x1xf32>
    %118 = vector.broadcast %110 : vector<24x1xf32> to vector<24x32xf32>
    %119 = arith.subf %104, %118 : vector<24x32xf32>
    %cst_38 = arith.constant 9.99999974E-6 : f32
    %120 = vector.broadcast %cst_38 : f32 to vector<24x1xf32>
    %121 = arith.addf %117, %120 : vector<24x1xf32>
    %122 = math.rsqrt %121 : vector<24x1xf32>
    %123 = vector.broadcast %122 : vector<24x1xf32> to vector<24x32xf32>
    %124 = arith.mulf %119, %123 : vector<24x32xf32>
    %125 = vector.broadcast %105 : vector<1x32xf32> to vector<24x32xf32>
    %126 = arith.mulf %124, %125 : vector<24x32xf32>
    %127 = vector.broadcast %106 : vector<1x32xf32> to vector<24x32xf32>
    %128 = arith.addf %126, %127 : vector<24x32xf32>
    %129 = arith.truncf %128 : vector<24x32xf32> to vector<24x32xbf16>
    %c0_39 = arith.constant 0 : index
    %c0_40 = arith.constant 0 : index
    %130 = vector.load %arg12[%c0_39, %c0_40] : memref<32x128xbf16, #tpu.memory_space<vmem>>, vector<32x128xbf16>
    %cst_41 = arith.constant dense<0.000000e+00> : vector<24x128xf32>
    %131 = tpu.matmul %129, %130, %cst_41 {dimension_numbers = #tpu.dot_dimension_numbers<[1], [0], [0], [1], [0, 0, 1, 1], [], []>} : vector<24x32xbf16>, vector<32x128xbf16>, vector<24x128xf32> -> vector<24x128xf32>
    %c0_42 = arith.constant 0 : index
    %c0_43 = arith.constant 0 : index
    %132 = vector.load %arg13[%c0_42, %c0_43] : memref<1x128xf32, #tpu.memory_space<vmem>>, vector<1x128xf32>
    %133 = vector.broadcast %132 : vector<1x128xf32> to vector<24x128xf32>
    %134 = arith.addf %131, %133 : vector<24x128xf32>
    %135 = arith.mulf %134, %134 : vector<24x128xf32>
    %136 = arith.mulf %134, %135 : vector<24x128xf32>
    %cst_44 = arith.constant 4.471500e-02 : f32
    %137 = vector.broadcast %cst_44 : f32 to vector<24x128xf32>
    %138 = arith.mulf %137, %136 : vector<24x128xf32>
    %139 = arith.addf %134, %138 : vector<24x128xf32>
    %cst_45 = arith.constant 0.797884583 : f32
    %140 = vector.broadcast %cst_45 : f32 to vector<24x128xf32>
    %141 = arith.mulf %140, %139 : vector<24x128xf32>
    %142 = math.tanh %141 : vector<24x128xf32>
    %cst_46 = arith.constant 1.000000e+00 : f32
    %143 = vector.broadcast %cst_46 : f32 to vector<24x128xf32>
    %144 = arith.addf %143, %142 : vector<24x128xf32>
    %cst_47 = arith.constant 5.000000e-01 : f32
    %145 = vector.broadcast %cst_47 : f32 to vector<24x128xf32>
    %146 = arith.mulf %145, %144 : vector<24x128xf32>
    %147 = arith.mulf %134, %146 : vector<24x128xf32>
    %148 = arith.truncf %147 : vector<24x128xf32> to vector<24x128xbf16>
    %c0_48 = arith.constant 0 : index
    %c0_49 = arith.constant 0 : index
    %149 = vector.load %arg14[%c0_48, %c0_49] : memref<128x32xbf16, #tpu.memory_space<vmem>>, vector<128x32xbf16>
    %cst_50 = arith.constant dense<0.000000e+00> : vector<24x32xf32>
    %150 = tpu.matmul %148, %149, %cst_50 {dimension_numbers = #tpu.dot_dimension_numbers<[1], [0], [0], [1], [0, 0, 1, 1], [], []>} : vector<24x128xbf16>, vector<128x32xbf16>, vector<24x32xf32> -> vector<24x32xf32>
    %c0_51 = arith.constant 0 : index
    %c0_52 = arith.constant 0 : index
    %151 = vector.load %arg15[%c0_51, %c0_52] : memref<1x32xf32, #tpu.memory_space<vmem>>, vector<1x32xf32>
    %152 = vector.broadcast %151 : vector<1x32xf32> to vector<24x32xf32>
    %153 = arith.addf %150, %152 : vector<24x32xf32>
    %154 = arith.addf %104, %153 : vector<24x32xf32>
    %155 = vector.extract_strided_slice %154 {offsets = [0, 0], sizes = [1, 32], strides = [1, 1]} : vector<24x32xf32> to vector<1x32xf32>
    %c0_53 = arith.constant 0 : index
    %c0_54 = arith.constant 0 : index
    %156 = vector.load %arg16[%c0_53, %c0_54] : memref<1x32xf32, #tpu.memory_space<vmem>>, vector<1x32xf32>
    %c0_55 = arith.constant 0 : index
    %c0_56 = arith.constant 0 : index
    %157 = vector.load %arg17[%c0_55, %c0_56] : memref<1x32xf32, #tpu.memory_space<vmem>>, vector<1x32xf32>
    %cst_57 = arith.constant dense<0.000000e+00> : vector<1xf32>
    %158 = vector.multi_reduction <add>, %155, %cst_57 [1] : vector<1x32xf32> to vector<1xf32>
    %159 = vector.shape_cast %158 : vector<1xf32> to vector<1x1xf32>
    %cst_58 = arith.constant 3.200000e+01 : f32
    %160 = vector.broadcast %cst_58 : f32 to vector<1x1xf32>
    %161 = arith.divf %159, %160 : vector<1x1xf32>
    %162 = vector.broadcast %161 : vector<1x1xf32> to vector<1x32xf32>
    %163 = arith.subf %155, %162 : vector<1x32xf32>
    %164 = arith.mulf %163, %163 : vector<1x32xf32>
    %cst_59 = arith.constant dense<0.000000e+00> : vector<1xf32>
    %165 = vector.multi_reduction <add>, %164, %cst_59 [1] : vector<1x32xf32> to vector<1xf32>
    %166 = vector.shape_cast %165 : vector<1xf32> to vector<1x1xf32>
    %cst_60 = arith.constant 3.200000e+01 : f32
    %167 = vector.broadcast %cst_60 : f32 to vector<1x1xf32>
    %168 = arith.divf %166, %167 : vector<1x1xf32>
    %169 = vector.broadcast %161 : vector<1x1xf32> to vector<1x32xf32>
    %170 = arith.subf %155, %169 : vector<1x32xf32>
    %cst_61 = arith.constant 9.99999974E-6 : f32
    %171 = vector.broadcast %cst_61 : f32 to vector<1x1xf32>
    %172 = arith.addf %168, %171 : vector<1x1xf32>
    %173 = math.rsqrt %172 : vector<1x1xf32>
    %174 = vector.broadcast %173 : vector<1x1xf32> to vector<1x32xf32>
    %175 = arith.mulf %170, %174 : vector<1x32xf32>
    %176 = arith.mulf %175, %156 : vector<1x32xf32>
    %177 = arith.addf %176, %157 : vector<1x32xf32>
    %178 = arith.truncf %177 : vector<1x32xf32> to vector<1x32xbf16>
    %c0_62 = arith.constant 0 : index
    %c0_63 = arith.constant 0 : index
    %179 = vector.load %arg18[%c0_62, %c0_63] : memref<32x128xbf16, #tpu.memory_space<vmem>>, vector<32x128xbf16>
    %cst_64 = arith.constant dense<0.000000e+00> : vector<1x128xf32>
    %180 = tpu.matmul %178, %179, %cst_64 {dimension_numbers = #tpu.dot_dimension_numbers<[1], [0], [0], [1], [0, 0, 1, 1], [], []>} : vector<1x32xbf16>, vector<32x128xbf16>, vector<1x128xf32> -> vector<1x128xf32>
    %c0_65 = arith.constant 0 : index
    %c0_66 = arith.constant 0 : index
    %181 = vector.load %arg19[%c0_65, %c0_66] : memref<1x128xf32, #tpu.memory_space<vmem>>, vector<1x128xf32>
    %182 = arith.addf %180, %181 : vector<1x128xf32>
    %183 = vector.shape_cast %182 : vector<1x128xf32> to vector<1x1x128xf32>
    %c0_67 = arith.constant 0 : index
    %c0_68 = arith.constant 0 : index
    %c0_69 = arith.constant 0 : index
    %184 = vector.load %arg20[%c0_67, %c0_68, %c0_69] : memref<1x1x128xf32, #tpu.memory_space<vmem>>, vector<1x1x128xf32>
    tpu.vector_store %arg20[%c0_67, %c0_68, %c0_69], %183 {strides = array<i32>} : memref<1x1x128xf32, #tpu.memory_space<vmem>>, vector<1x1x128xf32>,
    return
  }
  func.func @transform_0(%arg0: i32) -> (i32, i32, i32) {
    %c0_i32 = arith.constant 0 : i32
    %c0_i32_0 = arith.constant 0 : i32
    %c0_i32_1 = arith.constant 0 : i32
    return %arg0, %c0_i32, %c0_i32_0 : i32, i32, i32
  }
  func.func @transform_1(%arg0: i32) -> (i32, i32) {
    %c0_i32 = arith.constant 0 : i32
    %c0_i32_0 = arith.constant 0 : i32
    %c0_i32_1 = arith.constant 0 : i32
    return %c0_i32, %c0_i32_0 : i32, i32
  }
  func.func @transform_2(%arg0: i32) -> (i32, i32) {
    %c0_i32 = arith.constant 0 : i32
    %c0_i32_0 = arith.constant 0 : i32
    %c0_i32_1 = arith.constant 0 : i32
    return %c0_i32, %c0_i32_0 : i32, i32
  }
  func.func @transform_3(%arg0: i32) -> (i32, i32) {
    %c0_i32 = arith.constant 0 : i32
    %c0_i32_0 = arith.constant 0 : i32
    %c0_i32_1 = arith.constant 0 : i32
    return %c0_i32, %c0_i32_0 : i32, i32
  }
  func.func @transform_4(%arg0: i32) -> (i32, i32) {
    %c0_i32 = arith.constant 0 : i32
    %c0_i32_0 = arith.constant 0 : i32
    %c0_i32_1 = arith.constant 0 : i32
    return %c0_i32, %c0_i32_0 : i32, i32
  }
  func.func @transform_5(%arg0: i32) -> (i32, i32) {
    %c0_i32 = arith.constant 0 : i32
    %c0_i32_0 = arith.constant 0 : i32
    %c0_i32_1 = arith.constant 0 : i32
    return %c0_i32, %c0_i32_0 : i32, i32
  }
  func.func @transform_6(%arg0: i32) -> (i32, i32) {
    %c0_i32 = arith.constant 0 : i32
    %c0_i32_0 = arith.constant 0 : i32
    %c0_i32_1 = arith.constant 0 : i32
    return %c0_i32, %c0_i32_0 : i32, i32
  }
  func.func @transform_7(%arg0: i32) -> (i32, i32) {
    %c0_i32 = arith.constant 0 : i32
    %c0_i32_0 = arith.constant 0 : i32
    %c0_i32_1 = arith.constant 0 : i32
    return %c0_i32, %c0_i32_0 : i32, i32
  }
  func.func @transform_8(%arg0: i32) -> (i32, i32) {
    %c0_i32 = arith.constant 0 : i32
    %c0_i32_0 = arith.constant 0 : i32
    %c0_i32_1 = arith.constant 0 : i32
    return %c0_i32, %c0_i32_0 : i32, i32
  }
  func.func @transform_9(%arg0: i32) -> (i32, i32) {
    %c0_i32 = arith.constant 0 : i32
    %c0_i32_0 = arith.constant 0 : i32
    %c0_i32_1 = arith.constant 0 : i32
    return %c0_i32, %c0_i32_0 : i32, i32
  }
  func.func @transform_10(%arg0: i32) -> (i32, i32) {
    %c0_i32 = arith.constant 0 : i32
    %c0_i32_0 = arith.constant 0 : i32
    %c0_i32_1 = arith.constant 0 : i32
    return %c0_i32, %c0_i32_0 : i32, i32
  }
  func.func @transform_11(%arg0: i32) -> (i32, i32) {
    %c0_i32 = arith.constant 0 : i32
    %c0_i32_0 = arith.constant 0 : i32
    %c0_i32_1 = arith.constant 0 : i32
    return %c0_i32, %c0_i32_0 : i32, i32
  }
  func.func @transform_12(%arg0: i32) -> (i32, i32) {
    %c0_i32 = arith.constant 0 : i32
    %c0_i32_0 = arith.constant 0 : i32
    %c0_i32_1 = arith.constant 0 : i32
    return %c0_i32, %c0_i32_0 : i32, i32
  }
  func.func @transform_13(%arg0: i32) -> (i32, i32) {
    %c0_i32 = arith.constant 0 : i32
    %c0_i32_0 = arith.constant 0 : i32
    %c0_i32_1 = arith.constant 0 : i32
    return %c0_i32, %c0_i32_0 : i32, i32
  }
  func.func @transform_14(%arg0: i32) -> (i32, i32) {
    %c0_i32 = arith.constant 0 : i32
    %c0_i32_0 = arith.constant 0 : i32
    %c0_i32_1 = arith.constant 0 : i32
    return %c0_i32, %c0_i32_0 : i32, i32
  }
  func.func @transform_15(%arg0: i32) -> (i32, i32) {
    %c0_i32 = arith.constant 0 : i32
    %c0_i32_0 = arith.constant 0 : i32
    %c0_i32_1 = arith.constant 0 : i32
    return %c0_i32, %c0_i32_0 : i32, i32
  }
  func.func @transform_16(%arg0: i32) -> (i32, i32) {
    %c0_i32 = arith.constant 0 : i32
    %c0_i32_0 = arith.constant 0 : i32
    %c0_i32_1 = arith.constant 0 : i32
    return %c0_i32, %c0_i32_0 : i32, i32
  }
  func.func @transform_17(%arg0: i32) -> (i32, i32) {
    %c0_i32 = arith.constant 0 : i32
    %c0_i32_0 = arith.constant 0 : i32
    %c0_i32_1 = arith.constant 0 : i32
    return %c0_i32, %c0_i32_0 : i32, i32
  }
  func.func @transform_18(%arg0: i32) -> (i32, i32) {
    %c0_i32 = arith.constant 0 : i32
    %c0_i32_0 = arith.constant 0 : i32
    %c0_i32_1 = arith.constant 0 : i32
    return %c0_i32, %c0_i32_0 : i32, i32
  }
  func.func @transform_19(%arg0: i32) -> (i32, i32, i32) {
    %c0_i32 = arith.constant 0 : i32
    %c0_i32_0 = arith.constant 0 : i32
    %c0_i32_1 = arith.constant 0 : i32
    return %arg0, %c0_i32, %c0_i32_0 : i32, i32, i32
  }
}

</mosaic_0001>

<llo_original>
// kernel: vit_forward.1
$region0: #{vit_forward.1}
  #allocation0 [shape = 'u32[]', space=smem, size = 0x4, offset = 0x4, fixed_abs, tag = 'smem constant byte address 0x4 - core index']
  #allocation1 [shape = 'u32[144,128]{1,0:T(1,128)}', space=vmem, size = 0x12000, scoped, tag = 'internal scratch']
  %s0 = inlined_call_operand.vmem [shape: bf16[2,24,48], index: 0, kind: input, shape index: {}]
  %s1 = inlined_call_operand.vmem [shape: bf16[48,32], index: 1, kind: input, shape index: {}]
  %s2 = inlined_call_operand.vmem [shape: f32[24,32], index: 2, kind: input, shape index: {}]
  %s3 = inlined_call_operand.vmem [shape: f32[1,32], index: 3, kind: input, shape index: {}]
  %s4 = inlined_call_operand.vmem [shape: f32[1,32], index: 4, kind: input, shape index: {}]
  %s5 = inlined_call_operand.vmem [shape: bf16[32,96], index: 5, kind: input, shape index: {}]
  %s6 = inlined_call_operand.vmem [shape: f32[1,96], index: 6, kind: input, shape index: {}]
  %s7 = inlined_call_operand.vmem [shape: bf16[32,32], index: 7, kind: input, shape index: {}]
  %s8 = inlined_call_operand.vmem [shape: f32[1,32], index: 8, kind: input, shape index: {}]
  %s9 = inlined_call_operand.vmem [shape: f32[1,32], index: 9, kind: input, shape index: {}]
  %s10 = inlined_call_operand.vmem [shape: f32[1,32], index: 10, kind: input, shape index: {}]
  %s11 = inlined_call_operand.vmem [shape: bf16[32,128], index: 11, kind: input, shape index: {}]
  %s12 = inlined_call_operand.vmem [shape: f32[1,128], index: 12, kind: input, shape index: {}]
  %s13 = inlined_call_operand.vmem [shape: bf16[128,32], index: 13, kind: input, shape index: {}]
  %s14 = inlined_call_operand.vmem [shape: f32[1,32], index: 14, kind: input, shape index: {}]
  %s15 = inlined_call_operand.vmem [shape: f32[1,32], index: 15, kind: input, shape index: {}]
  %s16 = inlined_call_operand.vmem [shape: f32[1,32], index: 16, kind: input, shape index: {}]
  %s17 = inlined_call_operand.vmem [shape: bf16[32,128], index: 17, kind: input, shape index: {}]
  %s18 = inlined_call_operand.vmem [shape: f32[1,128], index: 18, kind: input, shape index: {}]
  %s19 = inlined_call_operand.hbm [shape: f32[2,1,128], index: 19, kind: output, shape index: {}]
  %s20 = sld [smem:[#allocation0]]
  $region109: #{vit_forward.1} parent=0
    _
  %s22 = ssub.s32 1, %s20
  %s23 = scalar_select 0, %s22, %s20
  $region1: #{vit_forward.1} parent=0
    #allocation2 [shape = 'u8[1024]{0}', space=vmem, size = 0x400, scoped, tag = 'output window, operand 0']
    #allocation3 [shape = 's32[2]{0}', space=sflag, size = 0x8, scoped, tag = 'scoped memory for vit_forward.1']
    %24 = vsyncpa [#allocation3], 0
    %s25 = scalar_lea.sflag [#allocation3], 1
    %26 = vsyncpa %s25, 0
    loop: start=0, step=1, limit=4
    $region2: #{vit_forward.1} parent=1 // loop_pre_header
      _
    $region3: #{vit_forward.1} parent=1 // loop_header
      %s28 = sphi 0, %s32
      %p29 = scmp.ge.s32.totalorder %s28, 4
      %s38 = sphi 0, %s40
      %s41 = sphi 0, %s38
      %s42 = sphi 0, %s41
      %s58 = sphi 0, %s42
      %s62 = sphi 0, %s62
      %s64 = sphi 0, %s62
      %s65 = sphi 0, %s64
      %s79 = sphi 0, %s65
      %s83 = sphi 0, %s83
      %s85 = sphi 0, %s83
      %s86 = sphi 0, %s85
      %s100 = sphi 0, %s86
      %s104 = sphi 0, %s104
      %s106 = sphi 0, %s104
      %s107 = sphi 0, %s106
      %s121 = sphi 0, %s107
      %s125 = sphi 0, %s125
      %s127 = sphi 0, %s125
      %s128 = sphi 0, %s127
      %s142 = sphi 0, %s128
      %s146 = sphi 0, %s146
      %s148 = sphi 0, %s146
      %s149 = sphi 0, %s148
      %s163 = sphi 0, %s149
      %s167 = sphi 0, %s167
      %s169 = sphi 0, %s167
      %s170 = sphi 0, %s169
      %s184 = sphi 0, %s170
      %s188 = sphi 0, %s188
      %s190 = sphi 0, %s188
      %s191 = sphi 0, %s190
      %s205 = sphi 0, %s191
      %s209 = sphi 0, %s209
      %s211 = sphi 0, %s209
      %s212 = sphi 0, %s211
      %s226 = sphi 0, %s212
      %s230 = sphi 0, %s230
      %s232 = sphi 0, %s230
      %s233 = sphi 0, %s232
      %s247 = sphi 0, %s233
      %s251 = sphi 0, %s251
      %s253 = sphi 0, %s251
      %s254 = sphi 0, %s253
      %s268 = sphi 0, %s254
      %s272 = sphi 0, %s272
      %s274 = sphi 0, %s272
      %s275 = sphi 0, %s274
      %s289 = sphi 0, %s275
      %s293 = sphi 0, %s293
      %s295 = sphi 0, %s293
      %s296 = sphi 0, %s295
      %s310 = sphi 0, %s296
      %s314 = sphi 0, %s314
      %s316 = sphi 0, %s314
      %s317 = sphi 0, %s316
      %s331 = sphi 0, %s317
      %s335 = sphi 0, %s335
      %s337 = sphi 0, %s335
      %s338 = sphi 0, %s337
      %s352 = sphi 0, %s338
      %s356 = sphi 0, %s356
      %s358 = sphi 0, %s356
      %s359 = sphi 0, %s358
      %s373 = sphi 0, %s359
      %s377 = sphi 0, %s377
      %s379 = sphi 0, %s377
      %s380 = sphi 0, %s379
      %s394 = sphi 0, %s380
      %s398 = sphi 0, %s398
      %s400 = sphi 0, %s398
      %s401 = sphi 0, %s400
      %s415 = sphi 0, %s401
      %s419 = sphi 0, %s419
      %s421 = sphi 0, %s419
      %s422 = sphi 0, %s421
      %s436 = sphi 0, %s422
      %s442 = sphi 0, %s444
      %s445 = sphi 0, %s442
      %s446 = sphi 0, %s445
      %s462 = sphi 0, %s446
    $region4: #{vit_forward.1} parent=1 // loop_header_branch
      %31 = sbr.rel (%p29) target = $region8
    $region5: #{vit_forward.1} parent=1 // loop_body
      %s33 = ssub.s32 %s28, 1
      %s34 = ssub.s32 %s28, 2
      %s35 = sadd.s32 %s28, 1
      %s36 = ssub.s32 %s28, %s35
      %p37 = scmp.eq.s32.totalorder %s36, 0
      %s39 = sadd.s32 %s38, 1
      %s40 = scalar_select %p37, %s38, %s39
      %p43 = pneg %p37
      %p44 = scmp.eq.s32.totalorder %s28, 1
      %p45 = por %p43, %p44
      %p46 = scmp.ne.s32.totalorder %s38, %s41
      %p47 = scmp.eq.s32.totalorder %s28, 0
      %p48 = por %p46, %p47
      %p49 = scmp.ne.s32.totalorder %s38, %s41
      %p50 = scmp.eq.s32.totalorder %s33, 1
      %p51 = por %p49, %p50
      %p52 = scmp.ne.s32.totalorder %s41, %s42
      %p53 = scmp.eq.s32.totalorder %s33, 0
      %p54 = por %p52, %p53
      %p55 = scmp.ne.s32.totalorder %s41, %s42
      %p56 = scmp.eq.s32.totalorder %s34, 1
      %p57 = por %p55, %p56
      %p59 = scmp.ne.s32.totalorder %s42, %s58
      %p60 = scmp.eq.s32.totalorder %s34, 0
      %p61 = por %p59, %p60
      %s63 = sadd.s32 %s62, 1
      %p66 = scmp.eq.s32.totalorder %s28, 1
      %p67 = scmp.ne.s32.totalorder %s62, %s64
      %p68 = scmp.eq.s32.totalorder %s28, 0
      %p69 = por %p67, %p68
      %p70 = scmp.ne.s32.totalorder %s62, %s64
      %p71 = scmp.eq.s32.totalorder %s33, 1
      %p72 = por %p70, %p71
      %p73 = scmp.ne.s32.totalorder %s64, %s65
      %p74 = scmp.eq.s32.totalorder %s33, 0
      %p75 = por %p73, %p74
      %p76 = scmp.ne.s32.totalorder %s64, %s65
      %p77 = scmp.eq.s32.totalorder %s34, 1
      %p78 = por %p76, %p77
      %p80 = scmp.ne.s32.totalorder %s65, %s79
      %p81 = scmp.eq.s32.totalorder %s34, 0
      %p82 = por %p80, %p81
      %s84 = sadd.s32 %s83, 1
      %p87 = scmp.eq.s32.totalorder %s28, 1
      %p88 = scmp.ne.s32.totalorder %s83, %s85
      %p89 = scmp.eq.s32.totalorder %s28, 0
      %p90 = por %p88, %p89
      %p91 = scmp.ne.s32.totalorder %s83, %s85
      %p92 = scmp.eq.s32.totalorder %s33, 1
      %p93 = por %p91, %p92
      %p94 = scmp.ne.s32.totalorder %s85, %s86
      %p95 = scmp.eq.s32.totalorder %s33, 0
      %p96 = por %p94, %p95
      %p97 = scmp.ne.s32.totalorder %s85, %s86
      %p98 = scmp.eq.s32.totalorder %s34, 1
      %p99 = por %p97, %p98
      %p101 = scmp.ne.s32.totalorder %s86, %s100
      %p102 = scmp.eq.s32.totalorder %s34, 0
      %p103 = por %p101, %p102
      %s105 = sadd.s32 %s104, 1
      %p108 = scmp.eq.s32.totalorder %s28, 1
      %p109 = scmp.ne.s32.totalorder %s104, %s106
      %p110 = scmp.eq.s32.totalorder %s28, 0
      %p111 = por %p109, %p110
      %p112 = scmp.ne.s32.totalorder %s104, %s106
      %p113 = scmp.eq.s32.totalorder %s33, 1
      %p114 = por %p112, %p113
      %p115 = scmp.ne.s32.totalorder %s106, %s107
      %p116 = scmp.eq.s32.totalorder %s33, 0
      %p117 = por %p115, %p116
      %p118 = scmp.ne.s32.totalorder %s106, %s107
      %p119 = scmp.eq.s32.totalorder %s34, 1
      %p120 = por %p118, %p119
      %p122 = scmp.ne.s32.totalorder %s107, %s121
      %p123 = scmp.eq.s32.totalorder %s34, 0
      %p124 = por %p122, %p123
      %s126 = sadd.s32 %s125, 1
      %p129 = scmp.eq.s32.totalorder %s28, 1
      %p130 = scmp.ne.s32.totalorder %s125, %s127
      %p131 = scmp.eq.s32.totalorder %s28, 0
      %p132 = por %p130, %p131
      %p133 = scmp.ne.s32.totalorder %s125, %s127
      %p134 = scmp.eq.s32.totalorder %s33, 1
      %p135 = por %p133, %p134
      %p136 = scmp.ne.s32.totalorder %s127, %s128
      %p137 = scmp.eq.s32.totalorder %s33, 0
      %p138 = por %p136, %p137
      %p139 = scmp.ne.s32.totalorder %s127, %s128
      %p140 = scmp.eq.s32.totalorder %s34, 1
      %p141 = por %p139, %p140
      %p143 = scmp.ne.s32.totalorder %s128, %s142
      %p144 = scmp.eq.s32.totalorder %s34, 0
      %p145 = por %p143, %p144
      %s147 = sadd.s32 %s146, 1
      %p150 = scmp.eq.s32.totalorder %s28, 1
      %p151 = scmp.ne.s32.totalorder %s146, %s148
      %p152 = scmp.eq.s32.totalorder %s28, 0
      %p153 = por %p151, %p152
      %p154 = scmp.ne.s32.totalorder %s146, %s148
      %p155 = scmp.eq.s32.totalorder %s33, 1
      %p156 = por %p154, %p155
      %p157 = scmp.ne.s32.totalorder %s148, %s149
      %p158 = scmp.eq.s32.totalorder %s33, 0
      %p159 = por %p157, %p158
      %p160 = scmp.ne.s32.totalorder %s148, %s149
      %p161 = scmp.eq.s32.totalorder %s34, 1
      %p162 = por %p160, %p161
      %p164 = scmp.ne.s32.totalorder %s149, %s163
      %p165 = scmp.eq.s32.totalorder %s34, 0
      %p166 = por %p164, %p165
      %s168 = sadd.s32 %s167, 1
      %p171 = scmp.eq.s32.totalorder %s28, 1
      %p172 = scmp.ne.s32.totalorder %s167, %s169
      %p173 = scmp.eq.s32.totalorder %s28, 0
      %p174 = por %p172, %p173
      %p175 = scmp.ne.s32.totalorder %s167, %s169
      %p176 = scmp.eq.s32.totalorder %s33, 1
      %p177 = por %p175, %p176
      %p178 = scmp.ne.s32.totalorder %s169, %s170
      %p179 = scmp.eq.s32.totalorder %s33, 0
      %p180 = por %p178, %p179
      %p181 = scmp.ne.s32.totalorder %s169, %s170
      %p182 = scmp.eq.s32.totalorder %s34, 1
      %p183 = por %p181, %p182
      %p185 = scmp.ne.s32.totalorder %s170, %s184
      %p186 = scmp.eq.s32.totalorder %s34, 0
      %p187 = por %p185, %p186
      %s189 = sadd.s32 %s188, 1
      %p192 = scmp.eq.s32.totalorder %s28, 1
      %p193 = scmp.ne.s32.totalorder %s188, %s190
      %p194 = scmp.eq.s32.totalorder %s28, 0
      %p195 = por %p193, %p194
      %p196 = scmp.ne.s32.totalorder %s188, %s190
      %p197 = scmp.eq.s32.totalorder %s33, 1
      %p198 = por %p196, %p197
      %p199 = scmp.ne.s32.totalorder %s190, %s191
      %p200 = scmp.eq.s32.totalorder %s33, 0
      %p201 = por %p199, %p200
      %p202 = scmp.ne.s32.totalorder %s190, %s191
      %p203 = scmp.eq.s32.totalorder %s34, 1
      %p204 = por %p202, %p203
      %p206 = scmp.ne.s32.totalorder %s191, %s205
      %p207 = scmp.eq.s32.totalorder %s34, 0
      %p208 = por %p206, %p207
      %s210 = sadd.s32 %s209, 1
      %p213 = scmp.eq.s32.totalorder %s28, 1
      %p214 = scmp.ne.s32.totalorder %s209, %s211
      %p215 = scmp.eq.s32.totalorder %s28, 0
      %p216 = por %p214, %p215
      %p217 = scmp.ne.s32.totalorder %s209, %s211
      %p218 = scmp.eq.s32.totalorder %s33, 1
      %p219 = por %p217, %p218
      %p220 = scmp.ne.s32.totalorder %s211, %s212
      %p221 = scmp.eq.s32.totalorder %s33, 0
      %p222 = por %p220, %p221
      %p223 = scmp.ne.s32.totalorder %s211, %s212
      %p224 = scmp.eq.s32.totalorder %s34, 1
      %p225 = por %p223, %p224
      %p227 = scmp.ne.s32.totalorder %s212, %s226
      %p228 = scmp.eq.s32.totalorder %s34, 0
      %p229 = por %p227, %p228
      %s231 = sadd.s32 %s230, 1
      %p234 = scmp.eq.s32.totalorder %s28, 1
      %p235 = scmp.ne.s32.totalorder %s230, %s232
      %p236 = scmp.eq.s32.totalorder %s28, 0
      %p237 = por %p235, %p236
      %p238 = scmp.ne.s32.totalorder %s230, %s232
      %p239 = scmp.eq.s32.totalorder %s33, 1
      %p240 = por %p238, %p239
      %p241 = scmp.ne.s32.totalorder %s232, %s233
      %p242 = scmp.eq.s32.totalorder %s33, 0
      %p243 = por %p241, %p242
      %p244 = scmp.ne.s32.totalorder %s232, %s233
      %p245 = scmp.eq.s32.totalorder %s34, 1
      %p246 = por %p244, %p245
      %p248 = scmp.ne.s32.totalorder %s233, %s247
      %p249 = scmp.eq.s32.totalorder %s34, 0
      %p250 = por %p248, %p249
      %s252 = sadd.s32 %s251, 1
      %p255 = scmp.eq.s32.totalorder %s28, 1
      %p256 = scmp.ne.s32.totalorder %s251, %s253
      %p257 = scmp.eq.s32.totalorder %s28, 0
      %p258 = por %p256, %p257
      %p259 = scmp.ne.s32.totalorder %s251, %s253
      %p260 = scmp.eq.s32.totalorder %s33, 1
      %p261 = por %p259, %p260
      %p262 = scmp.ne.s32.totalorder %s253, %s254
      %p263 = scmp.eq.s32.totalorder %s33, 0
      %p264 = por %p262, %p263
      %p265 = scmp.ne.s32.totalorder %s253, %s254
      %p266 = scmp.eq.s32.totalorder %s34, 1
      %p267 = por %p265, %p266
      %p269 = scmp.ne.s32.totalorder %s254, %s268
      %p270 = scmp.eq.s32.totalorder %s34, 0
      %p271 = por %p269, %p270
      %s273 = sadd.s32 %s272, 1
      %p276 = scmp.eq.s32.totalorder %s28, 1
      %p277 = scmp.ne.s32.totalorder %s272, %s274
      %p278 = scmp.eq.s32.totalorder %s28, 0
      %p279 = por %p277, %p278
      %p280 = scmp.ne.s32.totalorder %s272, %s274
      %p281 = scmp.eq.s32.totalorder %s33, 1
      %p282 = por %p280, %p281
      %p283 = scmp.ne.s32.totalorder %s274, %s275
      %p284 = scmp.eq.s32.totalorder %s33, 0
      %p285 = por %p283, %p284
      %p286 = scmp.ne.s32.totalorder %s274, %s275
      %p287 = scmp.eq.s32.totalorder %s34, 1
      %p288 = por %p286, %p287
      %p290 = scmp.ne.s32.totalorder %s275, %s289
      %p291 = scmp.eq.s32.totalorder %s34, 0
      %p292 = por %p290, %p291
      %s294 = sadd.s32 %s293, 1
      %p297 = scmp.eq.s32.totalorder %s28, 1
      %p298 = scmp.ne.s32.totalorder %s293, %s295
      %p299 = scmp.eq.s32.totalorder %s28, 0
      %p300 = por %p298, %p299
      %p301 = scmp.ne.s32.totalorder %s293, %s295
      %p302 = scmp.eq.s32.totalorder %s33, 1
      %p303 = por %p301, %p302
      %p304 = scmp.ne.s32.totalorder %s295, %s296
      %p305 = scmp.eq.s32.totalorder %s33, 0
      %p306 = por %p304, %p305
      %p307 = scmp.ne.s32.totalorder %s295, %s296
      %p308 = scmp.eq.s32.totalorder %s34, 1
      %p309 = por %p307, %p308
      %p311 = scmp.ne.s32.totalorder %s296, %s310
      %p312 = scmp.eq.s32.totalorder %s34, 0
      %p313 = por %p311, %p312
      %s315 = sadd.s32 %s314, 1
      %p318 = scmp.eq.s32.totalorder %s28, 1
      %p319 = scmp.ne.s32.totalorder %s314, %s316
      %p320 = scmp.eq.s32.totalorder %s28, 0
      %p321 = por %p319, %p320
      %p322 = scmp.ne.s32.totalorder %s314, %s316
      %p323 = scmp.eq.s32.totalorder %s33, 1
      %p324 = por %p322, %p323
      %p325 = scmp.ne.s32.totalorder %s316, %s317
      %p326 = scmp.eq.s32.totalorder %s33, 0
      %p327 = por %p325, %p326
      %p328 = scmp.ne.s32.totalorder %s316, %s317
      %p329 = scmp.eq.s32.totalorder %s34, 1
      %p330 = por %p328, %p329
      %p332 = scmp.ne.s32.totalorder %s317, %s331
      %p333 = scmp.eq.s32.totalorder %s34, 0
      %p334 = por %p332, %p333
      %s336 = sadd.s32 %s335, 1
      %p339 = scmp.eq.s32.totalorder %s28, 1
      %p340 = scmp.ne.s32.totalorder %s335, %s337
      %p341 = scmp.eq.s32.totalorder %s28, 0
      %p342 = por %p340, %p341
      %p343 = scmp.ne.s32.totalorder %s335, %s337
      %p344 = scmp.eq.s32.totalorder %s33, 1
      %p345 = por %p343, %p344
      %p346 = scmp.ne.s32.totalorder %s337, %s338
      %p347 = scmp.eq.s32.totalorder %s33, 0
      %p348 = por %p346, %p347
      %p349 = scmp.ne.s32.totalorder %s337, %s338
      %p350 = scmp.eq.s32.totalorder %s34, 1
      %p351 = por %p349, %p350
      %p353 = scmp.ne.s32.totalorder %s338, %s352
      %p354 = scmp.eq.s32.totalorder %s34, 0
      %p355 = por %p353, %p354
      %s357 = sadd.s32 %s356, 1
      %p360 = scmp.eq.s32.totalorder %s28, 1
      %p361 = scmp.ne.s32.totalorder %s356, %s358
      %p362 = scmp.eq.s32.totalorder %s28, 0
      %p363 = por %p361, %p362
      %p364 = scmp.ne.s32.totalorder %s356, %s358
      %p365 = scmp.eq.s32.totalorder %s33, 1
      %p366 = por %p364, %p365
      %p367 = scmp.ne.s32.totalorder %s358, %s359
      %p368 = scmp.eq.s32.totalorder %s33, 0
      %p369 = por %p367, %p368
      %p370 = scmp.ne.s32.totalorder %s358, %s359
      %p371 = scmp.eq.s32.totalorder %s34, 1
      %p372 = por %p370, %p371
      %p374 = scmp.ne.s32.totalorder %s359, %s373
      %p375 = scmp.eq.s32.totalorder %s34, 0
      %p376 = por %p374, %p375
      %s378 = sadd.s32 %s377, 1
      %p381 = scmp.eq.s32.totalorder %s28, 1
      %p382 = scmp.ne.s32.totalorder %s377, %s379
      %p383 = scmp.eq.s32.totalorder %s28, 0
      %p384 = por %p382, %p383
      %p385 = scmp.ne.s32.totalorder %s377, %s379
      %p386 = scmp.eq.s32.totalorder %s33, 1
      %p387 = por %p385, %p386
      %p388 = scmp.ne.s32.totalorder %s379, %s380
      %p389 = scmp.eq.s32.totalorder %s33, 0
      %p390 = por %p388, %p389
      %p391 = scmp.ne.s32.totalorder %s379, %s380
      %p392 = scmp.eq.s32.totalorder %s34, 1
      %p393 = por %p391, %p392
      %p395 = scmp.ne.s32.totalorder %s380, %s394
      %p396 = scmp.eq.s32.totalorder %s34, 0
      %p397 = por %p395, %p396
      %s399 = sadd.s32 %s398, 1
      %p402 = scmp.eq.s32.totalorder %s28, 1
      %p403 = scmp.ne.s32.totalorder %s398, %s400
      %p404 = scmp.eq.s32.totalorder %s28, 0
      %p405 = por %p403, %p404
      %p406 = scmp.ne.s32.totalorder %s398, %s400
      %p407 = scmp.eq.s32.totalorder %s33, 1
      %p408 = por %p406, %p407
      %p409 = scmp.ne.s32.totalorder %s400, %s401
      %p410 = scmp.eq.s32.totalorder %s33, 0
      %p411 = por %p409, %p410
      %p412 = scmp.ne.s32.totalorder %s400, %s401
      %p413 = scmp.eq.s32.totalorder %s34, 1
      %p414 = por %p412, %p413
      %p416 = scmp.ne.s32.totalorder %s401, %s415
      %p417 = scmp.eq.s32.totalorder %s34, 0
      %p418 = por %p416, %p417
      %s420 = sadd.s32 %s419, 1
      %p423 = scmp.eq.s32.totalorder %s28, 1
      %p424 = scmp.ne.s32.totalorder %s419, %s421
      %p425 = scmp.eq.s32.totalorder %s28, 0
      %p426 = por %p424, %p425
      %p427 = scmp.ne.s32.totalorder %s419, %s421
      %p428 = scmp.eq.s32.totalorder %s33, 1
      %p429 = por %p427, %p428
      %p430 = scmp.ne.s32.totalorder %s421, %s422
      %p431 = scmp.eq.s32.totalorder %s33, 0
      %p432 = por %p430, %p431
      %p433 = scmp.ne.s32.totalorder %s421, %s422
      %p434 = scmp.eq.s32.totalorder %s34, 1
      %p435 = por %p433, %p434
      %p437 = scmp.ne.s32.totalorder %s422, %s436
      %p438 = scmp.eq.s32.totalorder %s34, 0
      %p439 = por %p437, %p438
      %s440 = ssub.s32 %s28, %s35
      %p441 = scmp.eq.s32.totalorder %s440, 0
      %s443 = sadd.s32 %s442, 1
      %s444 = scalar_select %p441, %s442, %s443
      %p447 = pneg %p441
      %p448 = scmp.eq.s32.totalorder %s28, 1
      %p449 = por %p447, %p448
      %p450 = scmp.ne.s32.totalorder %s442, %s445
      %p451 = scmp.eq.s32.totalorder %s28, 0
      %p452 = por %p450, %p451
      %p453 = scmp.ne.s32.totalorder %s442, %s445
      %p454 = scmp.eq.s32.totalorder %s33, 1
      %p455 = por %p453, %p454
      %p456 = scmp.ne.s32.totalorder %s445, %s446
      %p457 = scmp.eq.s32.totalorder %s33, 0
      %p458 = por %p456, %p457
      %p459 = scmp.ne.s32.totalorder %s445, %s446
      %p460 = scmp.eq.s32.totalorder %s34, 1
      %p461 = por %p459, %p460
      %p463 = scmp.ne.s32.totalorder %s446, %s462
      %p464 = scmp.eq.s32.totalorder %s34, 0
      %p465 = por %p463, %p464
      %p466 = scmp.le.s32.totalorder 1, %s28
      %p467 = scmp.lt.s32.totalorder %s28, 3
      %p468 = pnand %p466, %p467
      %p469 = pneg %p468
      // Predicated region
      $region9: #{vit_forward.1} parent=5 // pred_check
        _
      $region10: #{vit_forward.1} parent=5 // pred_check_branch
        %471 = sbr.rel (%p468) target = $region12
      $region11: #{vit_forward.1} parent=5 // pred_region
        %s472 = ssub.s32 %s28, 1
        // Predicated region
        $region13: #{vit_forward.1} parent=11 // pred_check
          %p473 = pneg %p75
        $region14: #{vit_forward.1} parent=11 // pred_check_branch
          %475 = sbr.rel (%p473) target = $region16
        $region15: #{vit_forward.1} parent=11 // pred_region
          _
        $region16: #{vit_forward.1} parent=11 // pred_fallthru
          _
        // Predicated region
        $region17: #{vit_forward.1} parent=11 // pred_check
          %p476 = pneg %p96
        $region18: #{vit_forward.1} parent=11 // pred_check_branch
          %478 = sbr.rel (%p476) target = $region20
        $region19: #{vit_forward.1} parent=11 // pred_region
          _
        $region20: #{vit_forward.1} parent=11 // pred_fallthru
          _
        // Predicated region
        $region21: #{vit_forward.1} parent=11 // pred_check
          %p479 = pneg %p117
        $region22: #{vit_forward.1} parent=11 // pred_check_branch
          %481 = sbr.rel (%p479) target = $region24
        $region23: #{vit_forward.1} parent=11 // pred_region
          _
        $region24: #{vit_forward.1} parent=11 // pred_fallthru
          _
        // Predicated region
        $region25: #{vit_forward.1} parent=11 // pred_check
          %p482 = pneg %p138
        $region26: #{vit_forward.1} parent=11 // pred_check_branch
          %484 = sbr.rel (%p482) target = $region28
        $region27: #{vit_forward.1} parent=11 // pred_region
          _
        $region28: #{vit_forward.1} parent=11 // pred_fallthru
          _
        // Predicated region
        $region29: #{vit_forward.1} parent=11 // pred_check
          %p485 = pneg %p159
        $region30: #{vit_forward.1} parent=11 // pred_check_branch
          %487 = sbr.rel (%p485) target = $region32
        $region31: #{vit_forward.1} parent=11 // pred_region
          _
        $region32: #{vit_forward.1} parent=11 // pred_fallthru
          _
        // Predicated region
        $region33: #{vit_forward.1} parent=11 // pred_check
          %p488 = pneg %p180
        $region34: #{vit_forward.1} parent=11 // pred_check_branch
          %490 = sbr.rel (%p488) target = $region36
        $region35: #{vit_forward.1} parent=11 // pred_region
          _
        $region36: #{vit_forward.1} parent=11 // pred_fallthru
          _
        // Predicated region
        $region37: #{vit_forward.1} parent=11 // pred_check
          %p491 = pneg %p201
        $region38: #{vit_forward.1} parent=11 // pred_check_branch
          %493 = sbr.rel (%p491) target = $region40
        $region39: #{vit_forward.1} parent=11 // pred_region
          _
        $region40: #{vit_forward.1} parent=11 // pred_fallthru
          _
        // Predicated region
        $region41: #{vit_forward.1} parent=11 // pred_check
          %p494 = pneg %p222
        $region42: #{vit_forward.1} parent=11 // pred_check_branch
          %496 = sbr.rel (%p494) target = $region44
        $region43: #{vit_forward.1} parent=11 // pred_region
          _
        $region44: #{vit_forward.1} parent=11 // pred_fallthru
          _
        // Predicated region
        $region45: #{vit_forward.1} parent=11 // pred_check
          %p497 = pneg %p243
        $region46: #{vit_forward.1} parent=11 // pred_check_branch
          %499 = sbr.rel (%p497) target = $region48
        $region47: #{vit_forward.1} parent=11 // pred_region
          _
        $region48: #{vit_forward.1} parent=11 // pred_fallthru
          _
        // Predicated region
        $region49: #{vit_forward.1} parent=11 // pred_check
          %p500 = pneg %p264
        $region50: #{vit_forward.1} parent=11 // pred_check_branch
          %502 = sbr.rel (%p500) target = $region52
        $region51: #{vit_forward.1} parent=11 // pred_region
          _
        $region52: #{vit_forward.1} parent=11 // pred_fallthru
          _
        // Predicated region
        $region53: #{vit_forward.1} parent=11 // pred_check
          %p503 = pneg %p285
        $region54: #{vit_forward.1} parent=11 // pred_check_branch
          %505 = sbr.rel (%p503) target = $region56
        $region55: #{vit_forward.1} parent=11 // pred_region
          _
        $region56: #{vit_forward.1} parent=11 // pred_fallthru
          _
        // Predicated region
        $region57: #{vit_forward.1} parent=11 // pred_check
          %p506 = pneg %p306
        $region58: #{vit_forward.1} parent=11 // pred_check_branch
          %508 = sbr.rel (%p506) target = $region60
        $region59: #{vit_forward.1} parent=11 // pred_region
          _
        $region60: #{vit_forward.1} parent=11 // pred_fallthru
          _
        // Predicated region
        $region61: #{vit_forward.1} parent=11 // pred_check
          %p509 = pneg %p327
        $region62: #{vit_forward.1} parent=11 // pred_check_branch
          %511 = sbr.rel (%p509) target = $region64
        $region63: #{vit_forward.1} parent=11 // pred_region
          _
        $region64: #{vit_forward.1} parent=11 // pred_fallthru
          _
        // Predicated region
        $region65: #{vit_forward.1} parent=11 // pred_check
          %p512 = pneg %p348
        $region66: #{vit_forward.1} parent=11 // pred_check_branch
          %514 = sbr.rel (%p512) target = $region68
        $region67: #{vit_forward.1} parent=11 // pred_region
          _
        $region68: #{vit_forward.1} parent=11 // pred_fallthru
          _
        // Predicated region
        $region69: #{vit_forward.1} parent=11 // pred_check
          %p515 = pneg %p369
        $region70: #{vit_forward.1} parent=11 // pred_check_branch
          %517 = sbr.rel (%p515) target = $region72
        $region71: #{vit_forward.1} parent=11 // pred_region
          _
        $region72: #{vit_forward.1} parent=11 // pred_fallthru
          _
        // Predicated region
        $region73: #{vit_forward.1} parent=11 // pred_check
          %p518 = pneg %p390
        $region74: #{vit_forward.1} parent=11 // pred_check_branch
          %520 = sbr.rel (%p518) target = $region76
        $region75: #{vit_forward.1} parent=11 // pred_region
          _
        $region76: #{vit_forward.1} parent=11 // pred_fallthru
          _
        // Predicated region
        $region77: #{vit_forward.1} parent=11 // pred_check
          %p521 = pneg %p411
        $region78: #{vit_forward.1} parent=11 // pred_check_branch
          %523 = sbr.rel (%p521) target = $region80
        $region79: #{vit_forward.1} parent=11 // pred_region
          _
        $region80: #{vit_forward.1} parent=11 // pred_fallthru
          _
        // Predicated region
        $region81: #{vit_forward.1} parent=11 // pred_check
          %p524 = pneg %p432
        $region82: #{vit_forward.1} parent=11 // pred_check_branch
          %526 = sbr.rel (%p524) target = $region84
        $region83: #{vit_forward.1} parent=11 // pred_region
          _
        $region84: #{vit_forward.1} parent=11 // pred_fallthru
          _
      $region12: #{vit_forward.1} parent=5 // pred_fallthru
        _
      %p527 = scmp.lt.s32.totalorder %s28, 2
      // Predicated region
      $region85: #{vit_forward.1} parent=5 // pred_check
        %p528 = pneg %p527
      $region86: #{vit_forward.1} parent=5 // pred_check_branch
        %530 = sbr.rel (%p528) target = $region88
      $region87: #{vit_forward.1} parent=5 // pred_region
        // Predicated region
        $region89: #{vit_forward.1} parent=87 // pred_check
          %p531 = pneg %p48
        $region90: #{vit_forward.1} parent=87 // pred_check_branch
          %533 = sbr.rel (%p531) target = $region92
        $region91: #{vit_forward.1} parent=87 // pred_region
          %p534 = scmp.lt.s32.totalorder %s28, 1
          %s535 = scalar_select %p534, %s28, 1
          %s536 = smul.addr %s535, 3
          %s537 = smul.addr %s536, 4
          %s538 = scalar_lea.vmem %s0, %s537
        $region92: #{vit_forward.1} parent=87 // pred_fallthru
          _
      $region88: #{vit_forward.1} parent=5 // pred_fallthru
        _
      %p539 = scmp.le.s32.totalorder 1, %s28
      %p540 = scmp.lt.s32.totalorder %s28, 3
      %p541 = pnand %p539, %p540
      %p542 = pneg %p541
      // Predicated region
      $region93: #{vit_forward.1} parent=5 // pred_check
        _
      $region94: #{vit_forward.1} parent=5 // pred_check_branch
        %544 = sbr.rel (%p541) target = $region96
      $region95: #{vit_forward.1} parent=5 // pred_region
        %s545 = ssub.s32 %s28, 1
        %p546 = scmp.lt.s32.totalorder %s33, 1
        %s547 = scalar_select %p546, %s33, 1
        %s548 = smul.addr %s547, 3
        %s549 = smul.addr %s548, 4
        %s550 = scalar_lea.vmem %s0, %s549
        %p551 = pneg %p54
        %p552 = pneg %p51
        %p553 = pneg %p75
        %p554 = pneg %p72
        %p555 = pneg %p96
        %p556 = pneg %p93
        %p557 = pneg %p117
        %p558 = pneg %p114
        %p559 = pneg %p138
        %p560 = pneg %p135
        %p561 = pneg %p159
        %p562 = pneg %p156
        %p563 = pneg %p180
        %p564 = pneg %p177
        %p565 = pneg %p201
        %p566 = pneg %p198
        %p567 = pneg %p222
        %p568 = pneg %p219
        %p569 = pneg %p243
        %p570 = pneg %p240
        %p571 = pneg %p264
        %p572 = pneg %p261
        %p573 = pneg %p285
        %p574 = pneg %p282
        %p575 = pneg %p306
        %p576 = pneg %p303
        %p577 = pneg %p327
        %p578 = pneg %p324
        %p579 = pneg %p348
        %p580 = pneg %p345
        %p581 = pneg %p369
        %p582 = pneg %p366
        %p583 = pneg %p390
        %p584 = pneg %p387
        %p585 = pneg %p411
        %p586 = pneg %p408
        %p587 = pneg %p432
        %p588 = pneg %p429
        %p589 = pneg %p458
        %p590 = pneg %p455
        %s591 = sand.u32 %s445, 1
        %s592 = scalar_lea.sflag [#allocation3], %s591
        %s593 = sand.u32 %s445, 1
        %s594 = scalar_lea.vmem [#allocation2], %s593
        %p595 = scmp.lt.s32.totalorder %s33, 1
        %s596 = scalar_select %p595, %s33, 1
        %s597 = smul.addr %s596, 3
        %s598 = smul.addr %s597, 4
        %s599 = scalar_lea.vmem %s0, %s598
        %v601 = vld [vmem:[%s599] sm:$0xf]
        %v602 = vld [vmem:[%s599 + $0x4] sm:$0xf]
        %v603 = vld [vmem:[%s599 + $0x8] sm:$0xf]
        %v604 = vld [vmem:[%s1] sm:$0xf]
        %v605 = vld [vmem:[%s1 + $0x4] sm:$0xf]
        %v606 = vld [vmem:[%s1 + $0x8] sm:$0xf]
        %v607 = vld [vmem:[%s1 + $0xc] sm:$0xf]
        %v608 = vld [vmem:[%s1 + $0x10] sm:$0xf]
        %v609 = vld [vmem:[%s1 + $0x14] sm:$0xf]
        %v610 = vld [vmem:[%s2] sm:$0xff]
        %v611 = vld [vmem:[%s2 + $0x8] sm:$0xff]
        %v612 = vld [vmem:[%s2 + $0x10] sm:$0xff]
        %v616 = vunpack.c.l.b16 %v601
        %v617 = vunpack.c.l.b16 %v602
        %v618 = vunpack.c.l.b16 %v603
        %v619 = vpack.c.b16 %v617, %v616
        %v620 = vpack.c.b16 %v618, %v618
        %v627 = vunpack.c.l.b16 %v604
        %v628 = vunpack.c.l.b16 %v605
        %v629 = vunpack.c.l.b16 %v606
        %v630 = vunpack.c.l.b16 %v607
        %v631 = vunpack.c.l.b16 %v608
        %v632 = vunpack.c.l.b16 %v609
        %v633 = vpack.c.b16 %v628, %v627
        %v634 = vpack.c.b16 %v630, %v629
        %v635 = vpack.c.b16 %v632, %v631
        %vm639 = vcmask 392192
        %v641 = vsel %vm639, %v619, 0
        %v644 = vsel %vm639, %v620, 0
        %646 = vmatprep.subr.bf16.mxu0 0
        %647 = vmatpush1.bf16.msra.mxu0 %v633
        %648 = vmatprep.subr.bf16.mxu0 0
        %649 = vmatpush1.bf16.msra.mxu0 %v634
        %650 = vmatprep.subr.bf16.mxu0 0
        %651 = vmatpush1.bf16.msra.mxu0 %v635
        %652 = vmatprep.subr.bf16.mxu0 0
        %653 = vmatpush1.bf16.msra.mxu0 0
        %654 = vmatprep.subr.bf16.mxu0 0
        %655 = vmatpush1.bf16.msra.mxu0 0
        %656 = vmatprep.subr.bf16.mxu0 0
        %657 = vmatpush1.bf16.msra.mxu0 0
        %658 = vmatprep.subr.bf16.mxu0 0
        %659 = vmatpush1.bf16.msra.mxu0 0
        %660 = vmatprep.subr.bf16.mxu0 0
        %661 = vmatpush1.bf16.msra.mxu0 0
        %662 = vmatprep.subr.bf16.mxu0 0
        %663 = vmatpush1.bf16.msra.mxu0 0
        %664 = vmatprep.subr.bf16.mxu0 0
        %665 = vmatpush1.bf16.msra.mxu0 0
        %666 = vmatprep.subr.bf16.mxu0 0
        %667 = vmatpush1.bf16.msra.mxu0 0
        %668 = vmatprep.subr.bf16.mxu0 0
        %669 = vmatpush1.bf16.msra.mxu0 0
        %670 = vmatprep.subr.bf16.mxu0 0
        %671 = vmatpush1.bf16.msra.mxu0 0
        %672 = vmatprep.subr.bf16.mxu0 0
        %673 = vmatpush1.bf16.msra.mxu0 0
        %674 = vmatprep.subr.bf16.mxu0 0
        %675 = vmatpush1.bf16.msra.mxu0 0
        %676 = vmatprep.subr.bf16.mxu0 0
        %677 = vmatpush1.bf16.msra.mxu0 0
        %678 = vmatprep.mubr.bf16.mxu0 0
        %679 = vmatmul.mubr.bf16.gmra.mrb[0].mxu0 %v641
        %v680 = vpop.f32.mrb[0].mxu0
        %v681 = vadd.f32 %v610, %v680
        %v682 = vpop.f32.mrb[0].mxu0
        %v683 = vpop.f32.mrb[0].mxu0
        %v684 = vadd.f32 %v611, %v683
        %v685 = vpop.f32.mrb[0].mxu0
        %686 = vmatprep.mubr.bf16.mxu0 0
        %687 = vmatmul.mubr.bf16.gmra.mrb[0].mxu0 %v644
        %v688 = vpop.f32.mrb[0].mxu0
        %v689 = vadd.f32 %v612, %v688
        %v690 = vpop.f32.mrb[0].mxu0
        %v691 = vpop.f32.mrb[0].mxu0
        %v692 = vpop.f32.mrb[0].mxu0
        %693 = vdwg.mxu0
        %v694 = vld [vmem:[%s3] sm:$0x1]
        %v695 = vld [vmem:[%s4] sm:$0x1]
        %vm696 = vcmask 261120
        %v697 = vsel %vm696, %v681, 0.0
        %698 = vadd.xlane.f32.xlu0 %v697
        %v699 = vpop.xlane.xlu0 %698
        %v700 = vsel %vm696, %v684, 0.0
        %701 = vadd.xlane.f32.xlu0 %v700
        %v702 = vpop.xlane.xlu0 %701
        %v703 = vsel %vm696, %v689, 0.0
        %704 = vadd.xlane.f32.xlu0 %v703
        %v705 = vpop.xlane.xlu0 %704
        %v706 = vrcp.pop 32.0
        %v707 = vmul.f32 %v699, %v706
        %v708 = vmul.f32 %v702, %v706
        %v709 = vmul.f32 %v705, %v706
        %v710 = vsub.f32 %v681, %v707
        %v711 = vsub.f32 %v684, %v708
        %v712 = vsub.f32 %v689, %v709
        %v713 = vmul.f32 %v710, %v710
        %v714 = vmul.f32 %v711, %v711
        %v715 = vmul.f32 %v712, %v712
        %v716 = vsel %vm696, %v713, 0.0
        %717 = vadd.xlane.f32.xlu0 %v716
        %v718 = vpop.xlane.xlu0 %717
        %v719 = vsel %vm696, %v714, 0.0
        %720 = vadd.xlane.f32.xlu0 %v719
        %v721 = vpop.xlane.xlu0 %720
        %v722 = vsel %vm696, %v715, 0.0
        %723 = vadd.xlane.f32.xlu0 %v722
        %v724 = vpop.xlane.xlu0 %723
        %v725 = vmul.f32 %v718, %v706
        %v726 = vmul.f32 %v721, %v706
        %v727 = vmul.f32 %v724, %v706
        %v728 = vadd.f32 %v725, 1e-05
        %v729 = vadd.f32 %v726, 1e-05
        %v730 = vadd.f32 %v727, 1e-05
        %v731 = vrsqrt.pop %v728
        %v732 = vrsqrt.pop %v729
        %v733 = vrsqrt.pop %v730
        %v734 = vmul.f32 %v710, %v731
        %v735 = vmul.f32 %v711, %v732
        %v736 = vmul.f32 %v712, %v733
        %v738 = vlaneseq
        %v739 = vshrl.u32 %v738, 7
        %v740 = vsub.s32 0, %v739
        %v741 = vrot.slane %v694, %v740
        %v743 = vmul.f32 %v734, %v741
        %v744 = vmul.f32 %v735, %v741
        %v745 = vmul.f32 %v736, %v741
        %v747 = vlaneseq
        %v748 = vshrl.u32 %v747, 7
        %v749 = vsub.s32 0, %v748
        %v750 = vrot.slane %v695, %v749
        %v752 = vadd.f32 %v743, %v750
        %v753 = vadd.f32 %v744, %v750
        %v754 = vadd.f32 %v745, %v750
        %v755 = vpack.c.bf16 %v753, %v752
        %v756 = vpack.c.bf16 %v754, %v754
        %v757 = vld [vmem:[%s5] sm:$0xf]
        %v758 = vld [vmem:[%s5 + $0x4] sm:$0xf]
        %v759 = vld [vmem:[%s5 + $0x8] sm:$0xf]
        %v760 = vld [vmem:[%s5 + $0xc] sm:$0xf]
        %v761 = vld [vmem:[%s6] sm:$0x1]
        %v763 = vlaneseq
        %v764 = vshrl.u32 %v763, 7
        %v765 = vsub.s32 0, %v764
        %v766 = vrot.slane %v761, %v765
        %v772 = vunpack.c.l.b16 %v757
        %v773 = vunpack.c.l.b16 %v758
        %v774 = vunpack.c.l.b16 %v759
        %v775 = vunpack.c.l.b16 %v760
        %v776 = vpack.c.b16 %v773, %v772
        %v777 = vpack.c.b16 %v775, %v774
        %v781 = vsel %vm696, %v755, 0
        %v784 = vsel %vm696, %v756, 0
        %786 = vmatprep.subr.bf16.mxu0 0
        %787 = vmatpush1.bf16.msra.mxu0 %v776
        %788 = vmatprep.subr.bf16.mxu0 0
        %789 = vmatpush1.bf16.msra.mxu0 %v777
        %790 = vmatprep.subr.bf16.mxu0 0
        %791 = vmatpush1.bf16.msra.mxu0 0
        %792 = vmatprep.subr.bf16.mxu0 0
        %793 = vmatpush1.bf16.msra.mxu0 0
        %794 = vmatprep.subr.bf16.mxu0 0
        %795 = vmatpush1.bf16.msra.mxu0 0
        %796 = vmatprep.subr.bf16.mxu0 0
        %797 = vmatpush1.bf16.msra.mxu0 0
        %798 = vmatprep.subr.bf16.mxu0 0
        %799 = vmatpush1.bf16.msra.mxu0 0
        %800 = vmatprep.subr.bf16.mxu0 0
        %801 = vmatpush1.bf16.msra.mxu0 0
        %802 = vmatprep.subr.bf16.mxu0 0
        %803 = vmatpush1.bf16.msra.mxu0 0
        %804 = vmatprep.subr.bf16.mxu0 0
        %805 = vmatpush1.bf16.msra.mxu0 0
        %806 = vmatprep.subr.bf16.mxu0 0
        %807 = vmatpush1.bf16.msra.mxu0 0
        %808 = vmatprep.subr.bf16.mxu0 0
        %809 = vmatpush1.bf16.msra.mxu0 0
        %810 = vmatprep.subr.bf16.mxu0 0
        %811 = vmatpush1.bf16.msra.mxu0 0
        %812 = vmatprep.subr.bf16.mxu0 0
        %813 = vmatpush1.bf16.msra.mxu0 0
        %814 = vmatprep.subr.bf16.mxu0 0
        %815 = vmatpush1.bf16.msra.mxu0 0
        %816 = vmatprep.subr.bf16.mxu0 0
        %817 = vmatpush1.bf16.msra.mxu0 0
        %818 = vmatprep.mubr.bf16.mxu0 0
        %819 = vmatmul.mubr.bf16.gmra.mrb[0].mxu0 %v781
        %v820 = vpop.f32.mrb[0].mxu0
        %v821 = vadd.f32 %v766, %v820
        %v822 = vpop.f32.mrb[0].mxu0
        %v823 = vpop.f32.mrb[0].mxu0
        %v824 = vadd.f32 %v766, %v823
        %v825 = vpop.f32.mrb[0].mxu0
        %826 = vmatprep.mubr.bf16.mxu0 0
        %827 = vmatmul.mubr.bf16.gmra.mrb[0].mxu0 %v784
        %v828 = vpop.f32.mrb[0].mxu0
        %v829 = vadd.f32 %v766, %v828
        %v830 = vpop.f32.mrb[0].mxu0
        %v831 = vpop.f32.mrb[0].mxu0
        %v832 = vpop.f32.mrb[0].mxu0
        %833 = vdwg.mxu0
        %837 = vrot.lane.b32.xlu0 %v821, 120
        %v838 = vpop.permute.xlu0 %837
        %839 = vrot.lane.b32.xlu0 %v824, 120
        %v840 = vpop.permute.xlu0 %839
        %841 = vrot.lane.b32.xlu0 %v829, 120
        %v842 = vpop.permute.xlu0 %841
        %846 = vrot.lane.b32.xlu0 %v821, 112
        %v847 = vpop.permute.xlu0 %846
        %848 = vrot.lane.b32.xlu0 %v824, 112
        %v849 = vpop.permute.xlu0 %848
        %850 = vrot.lane.b32.xlu0 %v829, 112
        %v851 = vpop.permute.xlu0 %850
        %855 = vrot.lane.b32.xlu0 %v821, 104
        %v856 = vpop.permute.xlu0 %855
        %857 = vrot.lane.b32.xlu0 %v824, 104
        %v858 = vpop.permute.xlu0 %857
        %859 = vrot.lane.b32.xlu0 %v829, 104
        %v860 = vpop.permute.xlu0 %859
        %v864 = vpack.c.bf16 %v824, %v821
        %v865 = vpack.c.bf16 %v829, %v829
        %v866 = vpack.c.bf16 %v840, %v838
        %v867 = vpack.c.bf16 %v842, %v842
        %v868 = vpack.c.bf16 %v849, %v847
        %v869 = vpack.c.bf16 %v851, %v851
        %v870 = vpack.c.bf16 %v858, %v856
        %v871 = vpack.c.bf16 %v860, %v860
        %874 = vrot.lane.b32.xlu0 %v864, 96
        %v875 = vpop.permute.xlu0 %874
        %876 = vrot.lane.b32.xlu0 %v865, 96
        %v877 = vpop.permute.xlu0 %876
        %vm878 = vcmask 64512
        %v880 = vsel %vm878, %v864, 0
        %v883 = vsel %vm878, %v865, 0
        %v886 = vsel %vm878, %v875, 0
        %v889 = vsel %vm878, %v877, 0
        %891 = vmatprep.subr.bf16.mxu0 0
        %892 = vmatpush1.bf16.xpose.msra.mxu0 %v886
        %893 = vmatprep.subr.bf16.mxu0 0
        %894 = vmatpush1.bf16.xpose.msra.mxu0 %v889
        %895 = vmatprep.subr.bf16.mxu0 0
        %896 = vmatpush1.bf16.xpose.msra.mxu0 0
        %897 = vmatprep.subr.bf16.mxu0 0
        %898 = vmatpush1.bf16.xpose.msra.mxu0 0
        %899 = vmatprep.subr.bf16.mxu0 0
        %900 = vmatpush1.bf16.xpose.msra.mxu0 0
        %901 = vmatprep.subr.bf16.mxu0 0
        %902 = vmatpush1.bf16.xpose.msra.mxu0 0
        %903 = vmatprep.subr.bf16.mxu0 0
        %904 = vmatpush1.bf16.xpose.msra.mxu0 0
        %905 = vmatprep.subr.bf16.mxu0 0
        %906 = vmatpush1.bf16.xpose.msra.mxu0 0
        %907 = vmatprep.subr.bf16.mxu0 0
        %908 = vmatpush1.bf16.xpose.msra.mxu0 0
        %909 = vmatprep.subr.bf16.mxu0 0
        %910 = vmatpush1.bf16.xpose.msra.mxu0 0
        %911 = vmatprep.subr.bf16.mxu0 0
        %912 = vmatpush1.bf16.xpose.msra.mxu0 0
        %913 = vmatprep.subr.bf16.mxu0 0
        %914 = vmatpush1.bf16.xpose.msra.mxu0 0
        %915 = vmatprep.subr.bf16.mxu0 0
        %916 = vmatpush1.bf16.xpose.msra.mxu0 0
        %917 = vmatprep.subr.bf16.mxu0 0
        %918 = vmatpush1.bf16.xpose.msra.mxu0 0
        %919 = vmatprep.subr.bf16.mxu0 0
        %920 = vmatpush1.bf16.xpose.msra.mxu0 0
        %921 = vmatprep.subr.bf16.mxu0 0
        %922 = vmatpush1.bf16.xpose.msra.mxu0 0
        %923 = vmatprep.mubr.bf16.mxu0 0
        %924 = vmatmul.mubr.bf16.gmra.mrb[0].mxu0 %v880
        %v925 = vpop.f32.mrb[0].mxu0
        %v926 = vadd.f32 0.0, %v925
        %v927 = vpop.f32.mrb[0].mxu0
        %v928 = vpop.f32.mrb[0].mxu0
        %v929 = vadd.f32 0.0, %v928
        %v930 = vpop.f32.mrb[0].mxu0
        %931 = vmatprep.mubr.bf16.mxu0 0
        %932 = vmatmul.mubr.bf16.gmra.mrb[0].mxu0 %v883
        %v933 = vpop.f32.mrb[0].mxu0
        %v934 = vadd.f32 0.0, %v933
        %v935 = vpop.f32.mrb[0].mxu0
        %v936 = vpop.f32.mrb[0].mxu0
        %v937 = vpop.f32.mrb[0].mxu0
        %938 = vdwg.mxu0
        %941 = vrot.lane.b32.xlu0 %v866, 96
        %v942 = vpop.permute.xlu0 %941
        %943 = vrot.lane.b32.xlu0 %v867, 96
        %v944 = vpop.permute.xlu0 %943
        %v946 = vsel %vm878, %v866, 0
        %v949 = vsel %vm878, %v867, 0
        %v952 = vsel %vm878, %v942, 0
        %v955 = vsel %vm878, %v944, 0
        %957 = vmatprep.subr.bf16.mxu0 0
        %958 = vmatpush1.bf16.xpose.msra.mxu0 %v952
        %959 = vmatprep.subr.bf16.mxu0 0
        %960 = vmatpush1.bf16.xpose.msra.mxu0 %v955
        %961 = vmatprep.subr.bf16.mxu0 0
        %962 = vmatpush1.bf16.xpose.msra.mxu0 0
        %963 = vmatprep.subr.bf16.mxu0 0
        %964 = vmatpush1.bf16.xpose.msra.mxu0 0
        %965 = vmatprep.subr.bf16.mxu0 0
        %966 = vmatpush1.bf16.xpose.msra.mxu0 0
        %967 = vmatprep.subr.bf16.mxu0 0
        %968 = vmatpush1.bf16.xpose.msra.mxu0 0
        %969 = vmatprep.subr.bf16.mxu0 0
        %970 = vmatpush1.bf16.xpose.msra.mxu0 0
        %971 = vmatprep.subr.bf16.mxu0 0
        %972 = vmatpush1.bf16.xpose.msra.mxu0 0
        %973 = vmatprep.subr.bf16.mxu0 0
        %974 = vmatpush1.bf16.xpose.msra.mxu0 0
        %975 = vmatprep.subr.bf16.mxu0 0
        %976 = vmatpush1.bf16.xpose.msra.mxu0 0
        %977 = vmatprep.subr.bf16.mxu0 0
        %978 = vmatpush1.bf16.xpose.msra.mxu0 0
        %979 = vmatprep.subr.bf16.mxu0 0
        %980 = vmatpush1.bf16.xpose.msra.mxu0 0
        %981 = vmatprep.subr.bf16.mxu0 0
        %982 = vmatpush1.bf16.xpose.msra.mxu0 0
        %983 = vmatprep.subr.bf16.mxu0 0
        %984 = vmatpush1.bf16.xpose.msra.mxu0 0
        %985 = vmatprep.subr.bf16.mxu0 0
        %986 = vmatpush1.bf16.xpose.msra.mxu0 0
        %987 = vmatprep.subr.bf16.mxu0 0
        %988 = vmatpush1.bf16.xpose.msra.mxu0 0
        %989 = vmatprep.mubr.bf16.mxu0 0
        %990 = vmatmul.mubr.bf16.gmra.mrb[0].mxu0 %v946
        %v991 = vpop.f32.mrb[0].mxu0
        %v992 = vadd.f32 0.0, %v991
        %v993 = vpop.f32.mrb[0].mxu0
        %v994 = vpop.f32.mrb[0].mxu0
        %v995 = vadd.f32 0.0, %v994
        %v996 = vpop.f32.mrb[0].mxu0
        %997 = vmatprep.mubr.bf16.mxu0 0
        %998 = vmatmul.mubr.bf16.gmra.mrb[0].mxu0 %v949
        %v999 = vpop.f32.mrb[0].mxu0
        %v1000 = vadd.f32 0.0, %v999
        %v1001 = vpop.f32.mrb[0].mxu0
        %v1002 = vpop.f32.mrb[0].mxu0
        %v1003 = vpop.f32.mrb[0].mxu0
        %1004 = vdwg.mxu0
        %1007 = vrot.lane.b32.xlu0 %v868, 96
        %v1008 = vpop.permute.xlu0 %1007
        %1009 = vrot.lane.b32.xlu0 %v869, 96
        %v1010 = vpop.permute.xlu0 %1009
        %v1012 = vsel %vm878, %v868, 0
        %v1015 = vsel %vm878, %v869, 0
        %v1018 = vsel %vm878, %v1008, 0
        %v1021 = vsel %vm878, %v1010, 0
        %1023 = vmatprep.subr.bf16.mxu0 0
        %1024 = vmatpush1.bf16.xpose.msra.mxu0 %v1018
        %1025 = vmatprep.subr.bf16.mxu0 0
        %1026 = vmatpush1.bf16.xpose.msra.mxu0 %v1021
        %1027 = vmatprep.subr.bf16.mxu0 0
        %1028 = vmatpush1.bf16.xpose.msra.mxu0 0
        %1029 = vmatprep.subr.bf16.mxu0 0
        %1030 = vmatpush1.bf16.xpose.msra.mxu0 0
        %1031 = vmatprep.subr.bf16.mxu0 0
        %1032 = vmatpush1.bf16.xpose.msra.mxu0 0
        %1033 = vmatprep.subr.bf16.mxu0 0
        %1034 = vmatpush1.bf16.xpose.msra.mxu0 0
        %1035 = vmatprep.subr.bf16.mxu0 0
        %1036 = vmatpush1.bf16.xpose.msra.mxu0 0
        %1037 = vmatprep.subr.bf16.mxu0 0
        %1038 = vmatpush1.bf16.xpose.msra.mxu0 0
        %1039 = vmatprep.subr.bf16.mxu0 0
        %1040 = vmatpush1.bf16.xpose.msra.mxu0 0
        %1041 = vmatprep.subr.bf16.mxu0 0
        %1042 = vmatpush1.bf16.xpose.msra.mxu0 0
        %1043 = vmatprep.subr.bf16.mxu0 0
        %1044 = vmatpush1.bf16.xpose.msra.mxu0 0
        %1045 = vmatprep.subr.bf16.mxu0 0
        %1046 = vmatpush1.bf16.xpose.msra.mxu0 0
        %1047 = vmatprep.subr.bf16.mxu0 0
        %1048 = vmatpush1.bf16.xpose.msra.mxu0 0
        %1049 = vmatprep.subr.bf16.mxu0 0
        %1050 = vmatpush1.bf16.xpose.msra.mxu0 0
        %1051 = vmatprep.subr.bf16.mxu0 0
        %1052 = vmatpush1.bf16.xpose.msra.mxu0 0
        %1053 = vmatprep.subr.bf16.mxu0 0
        %1054 = vmatpush1.bf16.xpose.msra.mxu0 0
        %1055 = vmatprep.mubr.bf16.mxu0 0
        %1056 = vmatmul.mubr.bf16.gmra.mrb[0].mxu0 %v1012
        %v1057 = vpop.f32.mrb[0].mxu0
        %v1058 = vadd.f32 0.0, %v1057
        %v1059 = vpop.f32.mrb[0].mxu0
        %v1060 = vpop.f32.mrb[0].mxu0
        %v1061 = vadd.f32 0.0, %v1060
        %v1062 = vpop.f32.mrb[0].mxu0
        %1063 = vmatprep.mubr.bf16.mxu0 0
        %1064 = vmatmul.mubr.bf16.gmra.mrb[0].mxu0 %v1015
        %v1065 = vpop.f32.mrb[0].mxu0
        %v1066 = vadd.f32 0.0, %v1065
        %v1067 = vpop.f32.mrb[0].mxu0
        %v1068 = vpop.f32.mrb[0].mxu0
        %v1069 = vpop.f32.mrb[0].mxu0
        %1070 = vdwg.mxu0
        %1073 = vrot.lane.b32.xlu0 %v870, 96
        %v1074 = vpop.permute.xlu0 %1073
        %1075 = vrot.lane.b32.xlu0 %v871, 96
        %v1076 = vpop.permute.xlu0 %1075
        %v1078 = vsel %vm878, %v870, 0
        %v1081 = vsel %vm878, %v871, 0
        %v1084 = vsel %vm878, %v1074, 0
        %v1087 = vsel %vm878, %v1076, 0
        %1089 = vmatprep.subr.bf16.mxu0 0
        %1090 = vmatpush1.bf16.xpose.msra.mxu0 %v1084
        %1091 = vmatprep.subr.bf16.mxu0 0
        %1092 = vmatpush1.bf16.xpose.msra.mxu0 %v1087
        %1093 = vmatprep.subr.bf16.mxu0 0
        %1094 = vmatpush1.bf16.xpose.msra.mxu0 0
        %1095 = vmatprep.subr.bf16.mxu0 0
        %1096 = vmatpush1.bf16.xpose.msra.mxu0 0
        %1097 = vmatprep.subr.bf16.mxu0 0
        %1098 = vmatpush1.bf16.xpose.msra.mxu0 0
        %1099 = vmatprep.subr.bf16.mxu0 0
        %1100 = vmatpush1.bf16.xpose.msra.mxu0 0
        %1101 = vmatprep.subr.bf16.mxu0 0
        %1102 = vmatpush1.bf16.xpose.msra.mxu0 0
        %1103 = vmatprep.subr.bf16.mxu0 0
        %1104 = vmatpush1.bf16.xpose.msra.mxu0 0
        %1105 = vmatprep.subr.bf16.mxu0 0
        %1106 = vmatpush1.bf16.xpose.msra.mxu0 0
        %1107 = vmatprep.subr.bf16.mxu0 0
        %1108 = vmatpush1.bf16.xpose.msra.mxu0 0
        %1109 = vmatprep.subr.bf16.mxu0 0
        %1110 = vmatpush1.bf16.xpose.msra.mxu0 0
        %1111 = vmatprep.subr.bf16.mxu0 0
        %1112 = vmatpush1.bf16.xpose.msra.mxu0 0
        %1113 = vmatprep.subr.bf16.mxu0 0
        %1114 = vmatpush1.bf16.xpose.msra.mxu0 0
        %1115 = vmatprep.subr.bf16.mxu0 0
        %1116 = vmatpush1.bf16.xpose.msra.mxu0 0
        %1117 = vmatprep.subr.bf16.mxu0 0
        %1118 = vmatpush1.bf16.xpose.msra.mxu0 0
        %1119 = vmatprep.subr.bf16.mxu0 0
        %1120 = vmatpush1.bf16.xpose.msra.mxu0 0
        %1121 = vmatprep.mubr.bf16.mxu0 0
        %1122 = vmatmul.mubr.bf16.gmra.mrb[0].mxu0 %v1078
        %v1123 = vpop.f32.mrb[0].mxu0
        %v1124 = vadd.f32 0.0, %v1123
        %v1125 = vpop.f32.mrb[0].mxu0
        %v1126 = vpop.f32.mrb[0].mxu0
        %v1127 = vadd.f32 0.0, %v1126
        %v1128 = vpop.f32.mrb[0].mxu0
        %1129 = vmatprep.mubr.bf16.mxu0 0
        %1130 = vmatmul.mubr.bf16.gmra.mrb[0].mxu0 %v1081
        %v1131 = vpop.f32.mrb[0].mxu0
        %v1132 = vadd.f32 0.0, %v1131
        %v1133 = vpop.f32.mrb[0].mxu0
        %v1134 = vpop.f32.mrb[0].mxu0
        %v1135 = vpop.f32.mrb[0].mxu0
        %1136 = vdwg.mxu0
        %v1137 = vlaneseq
        %v1138 = vand.u32 %v1137, 127
        %vm1139 = vcmp.lt.s32.totalorder %v1138, 17
        %v1140 = vsel %vm1139, 1, 0
        %vm1141 = vcmp.eq.s32.totalorder %v1140, 1
        %v1142 = vsel %vm1141, %v926, -1e+30
        %v1143 = vsel %vm1141, %v929, -1e+30
        %v1144 = vsel %vm1141, %v934, -1e+30
        %v1145 = vsel %vm1141, %v992, -1e+30
        %v1146 = vsel %vm1141, %v995, -1e+30
        %v1147 = vsel %vm1141, %v1000, -1e+30
        %v1148 = vsel %vm1141, %v1058, -1e+30
        %v1149 = vsel %vm1141, %v1061, -1e+30
        %v1150 = vsel %vm1141, %v1066, -1e+30
        %v1151 = vsel %vm1141, %v1124, -1e+30
        %v1152 = vsel %vm1141, %v1127, -1e+30
        %v1153 = vsel %vm1141, %v1132, -1e+30
        %vm1154 = vcmask 195584
        %v1155 = vsel %vm1154, %v1142, -inf
        %1156 = vmax.xlane.f32.xlu0 %v1155
        %v1157 = vpop.xlane.xlu0 %1156
        %v1158 = vsel %vm1154, %v1143, -inf
        %1159 = vmax.xlane.f32.xlu0 %v1158
        %v1160 = vpop.xlane.xlu0 %1159
        %v1161 = vsel %vm1154, %v1144, -inf
        %1162 = vmax.xlane.f32.xlu0 %v1161
        %v1163 = vpop.xlane.xlu0 %1162
        %v1164 = vsel %vm1154, %v1145, -inf
        %1165 = vmax.xlane.f32.xlu0 %v1164
        %v1166 = vpop.xlane.xlu0 %1165
        %v1167 = vsel %vm1154, %v1146, -inf
        %1168 = vmax.xlane.f32.xlu0 %v1167
        %v1169 = vpop.xlane.xlu0 %1168
        %v1170 = vsel %vm1154, %v1147, -inf
        %1171 = vmax.xlane.f32.xlu0 %v1170
        %v1172 = vpop.xlane.xlu0 %1171
        %v1173 = vsel %vm1154, %v1148, -inf
        %1174 = vmax.xlane.f32.xlu0 %v1173
        %v1175 = vpop.xlane.xlu0 %1174
        %v1176 = vsel %vm1154, %v1149, -inf
        %1177 = vmax.xlane.f32.xlu0 %v1176
        %v1178 = vpop.xlane.xlu0 %1177
        %v1179 = vsel %vm1154, %v1150, -inf
        %1180 = vmax.xlane.f32.xlu0 %v1179
        %v1181 = vpop.xlane.xlu0 %1180
        %v1182 = vsel %vm1154, %v1151, -inf
        %1183 = vmax.xlane.f32.xlu0 %v1182
        %v1184 = vpop.xlane.xlu0 %1183
        %v1185 = vsel %vm1154, %v1152, -inf
        %1186 = vmax.xlane.f32.xlu0 %v1185
        %v1187 = vpop.xlane.xlu0 %1186
        %v1188 = vsel %vm1154, %v1153, -inf
        %1189 = vmax.xlane.f32.xlu0 %v1188
        %v1190 = vpop.xlane.xlu0 %1189
        %v1191 = vsub.f32 %v1142, %v1157
        %v1192 = vsub.f32 %v1143, %v1160
        %v1193 = vsub.f32 %v1144, %v1163
        %v1194 = vsub.f32 %v1145, %v1166
        %v1195 = vsub.f32 %v1146, %v1169
        %v1196 = vsub.f32 %v1147, %v1172
        %v1197 = vsub.f32 %v1148, %v1175
        %v1198 = vsub.f32 %v1149, %v1178
        %v1199 = vsub.f32 %v1150, %v1181
        %v1200 = vsub.f32 %v1151, %v1184
        %v1201 = vsub.f32 %v1152, %v1187
        %v1202 = vsub.f32 %v1153, %v1190
        %v1203 = vmul.f32 %v1191, 1.442695
        %v1204 = vpow.pop %v1203
        %v1205 = vmul.f32 %v1192, 1.442695
        %v1206 = vpow.pop %v1205
        %v1207 = vmul.f32 %v1193, 1.442695
        %v1208 = vpow.pop %v1207
        %v1209 = vmul.f32 %v1194, 1.442695
        %v1210 = vpow.pop %v1209
        %v1211 = vmul.f32 %v1195, 1.442695
        %v1212 = vpow.pop %v1211
        %v1213 = vmul.f32 %v1196, 1.442695
        %v1214 = vpow.pop %v1213
        %v1215 = vmul.f32 %v1197, 1.442695
        %v1216 = vpow.pop %v1215
        %v1217 = vmul.f32 %v1198, 1.442695
        %v1218 = vpow.pop %v1217
        %v1219 = vmul.f32 %v1199, 1.442695
        %v1220 = vpow.pop %v1219
        %v1221 = vmul.f32 %v1200, 1.442695
        %v1222 = vpow.pop %v1221
        %v1223 = vmul.f32 %v1201, 1.442695
        %v1224 = vpow.pop %v1223
        %v1225 = vmul.f32 %v1202, 1.442695
        %v1226 = vpow.pop %v1225
        %v1227 = vsel %vm1154, %v1204, 0.0
        %1228 = vadd.xlane.f32.xlu0 %v1227
        %v1229 = vpop.xlane.xlu0 %1228
        %v1230 = vsel %vm1154, %v1206, 0.0
        %1231 = vadd.xlane.f32.xlu0 %v1230
        %v1232 = vpop.xlane.xlu0 %1231
        %v1233 = vsel %vm1154, %v1208, 0.0
        %1234 = vadd.xlane.f32.xlu0 %v1233
        %v1235 = vpop.xlane.xlu0 %1234
        %v1236 = vsel %vm1154, %v1210, 0.0
        %1237 = vadd.xlane.f32.xlu0 %v1236
        %v1238 = vpop.xlane.xlu0 %1237
        %v1239 = vsel %vm1154, %v1212, 0.0
        %1240 = vadd.xlane.f32.xlu0 %v1239
        %v1241 = vpop.xlane.xlu0 %1240
        %v1242 = vsel %vm1154, %v1214, 0.0
        %1243 = vadd.xlane.f32.xlu0 %v1242
        %v1244 = vpop.xlane.xlu0 %1243
        %v1245 = vsel %vm1154, %v1216, 0.0
        %1246 = vadd.xlane.f32.xlu0 %v1245
        %v1247 = vpop.xlane.xlu0 %1246
        %v1248 = vsel %vm1154, %v1218, 0.0
        %1249 = vadd.xlane.f32.xlu0 %v1248
        %v1250 = vpop.xlane.xlu0 %1249
        %v1251 = vsel %vm1154, %v1220, 0.0
        %1252 = vadd.xlane.f32.xlu0 %v1251
        %v1253 = vpop.xlane.xlu0 %1252
        %v1254 = vsel %vm1154, %v1222, 0.0
        %1255 = vadd.xlane.f32.xlu0 %v1254
        %v1256 = vpop.xlane.xlu0 %1255
        %v1257 = vsel %vm1154, %v1224, 0.0
        %1258 = vadd.xlane.f32.xlu0 %v1257
        %v1259 = vpop.xlane.xlu0 %1258
        %v1260 = vsel %vm1154, %v1226, 0.0
        %1261 = vadd.xlane.f32.xlu0 %v1260
        %v1262 = vpop.xlane.xlu0 %1261
        %v1263 = vrcp.pop %v1229
        %v1264 = vrcp.pop %v1232
        %v1265 = vrcp.pop %v1235
        %v1266 = vrcp.pop %v1238
        %v1267 = vrcp.pop %v1241
        %v1268 = vrcp.pop %v1244
        %v1269 = vrcp.pop %v1247
        %v1270 = vrcp.pop %v1250
        %v1271 = vrcp.pop %v1253
        %v1272 = vrcp.pop %v1256
        %v1273 = vrcp.pop %v1259
        %v1274 = vrcp.pop %v1262
        %v1275 = vmul.f32 %v1204, %v1263
        %v1276 = vmul.f32 %v1206, %v1264
        %v1277 = vmul.f32 %v1208, %v1265
        %v1278 = vmul.f32 %v1210, %v1266
        %v1279 = vmul.f32 %v1212, %v1267
        %v1280 = vmul.f32 %v1214, %v1268
        %v1281 = vmul.f32 %v1216, %v1269
        %v1282 = vmul.f32 %v1218, %v1270
        %v1283 = vmul.f32 %v1220, %v1271
        %v1284 = vmul.f32 %v1222, %v1272
        %v1285 = vmul.f32 %v1224, %v1273
        %v1286 = vmul.f32 %v1226, %v1274
        %v1287 = vpack.c.bf16 %v1276, %v1275
        %v1288 = vpack.c.bf16 %v1277, %v1277
        %v1289 = vpack.c.bf16 %v1279, %v1278
        %v1290 = vpack.c.bf16 %v1280, %v1280
        %v1291 = vpack.c.bf16 %v1282, %v1281
        %v1292 = vpack.c.bf16 %v1283, %v1283
        %v1293 = vpack.c.bf16 %v1285, %v1284
        %v1294 = vpack.c.bf16 %v1286, %v1286
        %1295 = vrot.lane.b32.xlu0 %v864, 64
        %v1296 = vpop.permute.xlu0 %1295
        %1297 = vrot.lane.b32.xlu0 %v865, 64
        %v1298 = vpop.permute.xlu0 %1297
        %v1301 = vsel %vm1154, %v1287, 0
        %v1304 = vsel %vm1154, %v1288, 0
        %vm1306 = vcmask 1043456
        %v1308 = vsel %vm1306, %v1298, 0
        %1310 = vmatprep.subr.bf16.mxu0 0
        %1311 = vmatpush1.bf16.msra.mxu0 %v1296
        %1312 = vmatprep.subr.bf16.mxu0 0
        %1313 = vmatpush1.bf16.msra.mxu0 %v1308
        %1314 = vmatprep.subr.bf16.mxu0 0
        %1315 = vmatpush1.bf16.msra.mxu0 0
        %1316 = vmatprep.subr.bf16.mxu0 0
        %1317 = vmatpush1.bf16.msra.mxu0 0
        %1318 = vmatprep.subr.bf16.mxu0 0
        %1319 = vmatpush1.bf16.msra.mxu0 0
        %1320 = vmatprep.subr.bf16.mxu0 0
        %1321 = vmatpush1.bf16.msra.mxu0 0
        %1322 = vmatprep.subr.bf16.mxu0 0
        %1323 = vmatpush1.bf16.msra.mxu0 0
        %1324 = vmatprep.subr.bf16.mxu0 0
        %1325 = vmatpush1.bf16.msra.mxu0 0
        %1326 = vmatprep.subr.bf16.mxu0 0
        %1327 = vmatpush1.bf16.msra.mxu0 0
        %1328 = vmatprep.subr.bf16.mxu0 0
        %1329 = vmatpush1.bf16.msra.mxu0 0
        %1330 = vmatprep.subr.bf16.mxu0 0
        %1331 = vmatpush1.bf16.msra.mxu0 0
        %1332 = vmatprep.subr.bf16.mxu0 0
        %1333 = vmatpush1.bf16.msra.mxu0 0
        %1334 = vmatprep.subr.bf16.mxu0 0
        %1335 = vmatpush1.bf16.msra.mxu0 0
        %1336 = vmatprep.subr.bf16.mxu0 0
        %1337 = vmatpush1.bf16.msra.mxu0 0
        %1338 = vmatprep.subr.bf16.mxu0 0
        %1339 = vmatpush1.bf16.msra.mxu0 0
        %1340 = vmatprep.subr.bf16.mxu0 0
        %1341 = vmatpush1.bf16.msra.mxu0 0
        %1342 = vmatprep.mubr.bf16.mxu0 0
        %1343 = vmatmul.mubr.bf16.gmra.mrb[0].mxu0 %v1301
        %v1344 = vpop.f32.mrb[0].mxu0
        %v1345 = vadd.f32 0.0, %v1344
        %v1346 = vpop.f32.mrb[0].mxu0
        %v1347 = vpop.f32.mrb[0].mxu0
        %v1348 = vadd.f32 0.0, %v1347
        %v1349 = vpop.f32.mrb[0].mxu0
        %1350 = vmatprep.mubr.bf16.mxu0 0
        %1351 = vmatmul.mubr.bf16.gmra.mrb[0].mxu0 %v1304
        %v1352 = vpop.f32.mrb[0].mxu0
        %v1353 = vadd.f32 0.0, %v1352
        %v1354 = vpop.f32.mrb[0].mxu0
        %v1355 = vpop.f32.mrb[0].mxu0
        %v1356 = vpop.f32.mrb[0].mxu0
        %1357 = vdwg.mxu0
        %1358 = vrot.lane.b32.xlu0 %v866, 64
        %v1359 = vpop.permute.xlu0 %1358
        %1360 = vrot.lane.b32.xlu0 %v867, 64
        %v1361 = vpop.permute.xlu0 %1360
        %v1364 = vsel %vm1154, %v1289, 0
        %v1367 = vsel %vm1154, %v1290, 0
        %v1370 = vsel %vm1306, %v1361, 0
        %1372 = vmatprep.subr.bf16.mxu0 0
        %1373 = vmatpush1.bf16.msra.mxu0 %v1359
        %1374 = vmatprep.subr.bf16.mxu0 0
        %1375 = vmatpush1.bf16.msra.mxu0 %v1370
        %1376 = vmatprep.subr.bf16.mxu0 0
        %1377 = vmatpush1.bf16.msra.mxu0 0
        %1378 = vmatprep.subr.bf16.mxu0 0
        %1379 = vmatpush1.bf16.msra.mxu0 0
        %1380 = vmatprep.subr.bf16.mxu0 0
        %1381 = vmatpush1.bf16.msra.mxu0 0
        %1382 = vmatprep.subr.bf16.mxu0 0
        %1383 = vmatpush1.bf16.msra.mxu0 0
        %1384 = vmatprep.subr.bf16.mxu0 0
        %1385 = vmatpush1.bf16.msra.mxu0 0
        %1386 = vmatprep.subr.bf16.mxu0 0
        %1387 = vmatpush1.bf16.msra.mxu0 0
        %1388 = vmatprep.subr.bf16.mxu0 0
        %1389 = vmatpush1.bf16.msra.mxu0 0
        %1390 = vmatprep.subr.bf16.mxu0 0
        %1391 = vmatpush1.bf16.msra.mxu0 0
        %1392 = vmatprep.subr.bf16.mxu0 0
        %1393 = vmatpush1.bf16.msra.mxu0 0
        %1394 = vmatprep.subr.bf16.mxu0 0
        %1395 = vmatpush1.bf16.msra.mxu0 0
        %1396 = vmatprep.subr.bf16.mxu0 0
        %1397 = vmatpush1.bf16.msra.mxu0 0
        %1398 = vmatprep.subr.bf16.mxu0 0
        %1399 = vmatpush1.bf16.msra.mxu0 0
        %1400 = vmatprep.subr.bf16.mxu0 0
        %1401 = vmatpush1.bf16.msra.mxu0 0
        %1402 = vmatprep.subr.bf16.mxu0 0
        %1403 = vmatpush1.bf16.msra.mxu0 0
        %1404 = vmatprep.mubr.bf16.mxu0 0
        %1405 = vmatmul.mubr.bf16.gmra.mrb[0].mxu0 %v1364
        %v1406 = vpop.f32.mrb[0].mxu0
        %v1407 = vadd.f32 0.0, %v1406
        %v1408 = vpop.f32.mrb[0].mxu0
        %v1409 = vpop.f32.mrb[0].mxu0
        %v1410 = vadd.f32 0.0, %v1409
        %v1411 = vpop.f32.mrb[0].mxu0
        %1412 = vmatprep.mubr.bf16.mxu0 0
        %1413 = vmatmul.mubr.bf16.gmra.mrb[0].mxu0 %v1367
        %v1414 = vpop.f32.mrb[0].mxu0
        %v1415 = vadd.f32 0.0, %v1414
        %v1416 = vpop.f32.mrb[0].mxu0
        %v1417 = vpop.f32.mrb[0].mxu0
        %v1418 = vpop.f32.mrb[0].mxu0
        %1419 = vdwg.mxu0
        %1420 = vrot.lane.b32.xlu0 %v868, 64
        %v1421 = vpop.permute.xlu0 %1420
        %1422 = vrot.lane.b32.xlu0 %v869, 64
        %v1423 = vpop.permute.xlu0 %1422
        %v1426 = vsel %vm1154, %v1291, 0
        %v1429 = vsel %vm1154, %v1292, 0
        %v1432 = vsel %vm1306, %v1423, 0
        %1434 = vmatprep.subr.bf16.mxu0 0
        %1435 = vmatpush1.bf16.msra.mxu0 %v1421
        %1436 = vmatprep.subr.bf16.mxu0 0
        %1437 = vmatpush1.bf16.msra.mxu0 %v1432
        %1438 = vmatprep.subr.bf16.mxu0 0
        %1439 = vmatpush1.bf16.msra.mxu0 0
        %1440 = vmatprep.subr.bf16.mxu0 0
        %1441 = vmatpush1.bf16.msra.mxu0 0
        %1442 = vmatprep.subr.bf16.mxu0 0
        %1443 = vmatpush1.bf16.msra.mxu0 0
        %1444 = vmatprep.subr.bf16.mxu0 0
        %1445 = vmatpush1.bf16.msra.mxu0 0
        %1446 = vmatprep.subr.bf16.mxu0 0
        %1447 = vmatpush1.bf16.msra.mxu0 0
        %1448 = vmatprep.subr.bf16.mxu0 0
        %1449 = vmatpush1.bf16.msra.mxu0 0
        %1450 = vmatprep.subr.bf16.mxu0 0
        %1451 = vmatpush1.bf16.msra.mxu0 0
        %1452 = vmatprep.subr.bf16.mxu0 0
        %1453 = vmatpush1.bf16.msra.mxu0 0
        %1454 = vmatprep.subr.bf16.mxu0 0
        %1455 = vmatpush1.bf16.msra.mxu0 0
        %1456 = vmatprep.subr.bf16.mxu0 0
        %1457 = vmatpush1.bf16.msra.mxu0 0
        %1458 = vmatprep.subr.bf16.mxu0 0
        %1459 = vmatpush1.bf16.msra.mxu0 0
        %1460 = vmatprep.subr.bf16.mxu0 0
        %1461 = vmatpush1.bf16.msra.mxu0 0
        %1462 = vmatprep.subr.bf16.mxu0 0
        %1463 = vmatpush1.bf16.msra.mxu0 0
        %1464 = vmatprep.subr.bf16.mxu0 0
        %1465 = vmatpush1.bf16.msra.mxu0 0
        %1466 = vmatprep.mubr.bf16.mxu0 0
        %1467 = vmatmul.mubr.bf16.gmra.mrb[0].mxu0 %v1426
        %v1468 = vpop.f32.mrb[0].mxu0
        %v1469 = vadd.f32 0.0, %v1468
        %v1470 = vpop.f32.mrb[0].mxu0
        %v1471 = vpop.f32.mrb[0].mxu0
        %v1472 = vadd.f32 0.0, %v1471
        %v1473 = vpop.f32.mrb[0].mxu0
        %1474 = vmatprep.mubr.bf16.mxu0 0
        %1475 = vmatmul.mubr.bf16.gmra.mrb[0].mxu0 %v1429
        %v1476 = vpop.f32.mrb[0].mxu0
        %v1477 = vadd.f32 0.0, %v1476
        %v1478 = vpop.f32.mrb[0].mxu0
        %v1479 = vpop.f32.mrb[0].mxu0
        %v1480 = vpop.f32.mrb[0].mxu0
        %1481 = vdwg.mxu0
        %1482 = vrot.lane.b32.xlu0 %v870, 64
        %v1483 = vpop.permute.xlu0 %1482
        %1484 = vrot.lane.b32.xlu0 %v871, 64
        %v1485 = vpop.permute.xlu0 %1484
        %v1488 = vsel %vm1154, %v1293, 0
        %v1491 = vsel %vm1154, %v1294, 0
        %v1494 = vsel %vm1306, %v1485, 0
        %1496 = vmatprep.subr.bf16.mxu0 0
        %1497 = vmatpush1.bf16.msra.mxu0 %v1483
        %1498 = vmatprep.subr.bf16.mxu0 0
        %1499 = vmatpush1.bf16.msra.mxu0 %v1494
        %1500 = vmatprep.subr.bf16.mxu0 0
        %1501 = vmatpush1.bf16.msra.mxu0 0
        %1502 = vmatprep.subr.bf16.mxu0 0
        %1503 = vmatpush1.bf16.msra.mxu0 0
        %1504 = vmatprep.subr.bf16.mxu0 0
        %1505 = vmatpush1.bf16.msra.mxu0 0
        %1506 = vmatprep.subr.bf16.mxu0 0
        %1507 = vmatpush1.bf16.msra.mxu0 0
        %1508 = vmatprep.subr.bf16.mxu0 0
        %1509 = vmatpush1.bf16.msra.mxu0 0
        %1510 = vmatprep.subr.bf16.mxu0 0
        %1511 = vmatpush1.bf16.msra.mxu0 0
        %1512 = vmatprep.subr.bf16.mxu0 0
        %1513 = vmatpush1.bf16.msra.mxu0 0
        %1514 = vmatprep.subr.bf16.mxu0 0
        %1515 = vmatpush1.bf16.msra.mxu0 0
        %1516 = vmatprep.subr.bf16.mxu0 0
        %1517 = vmatpush1.bf16.msra.mxu0 0
        %1518 = vmatprep.subr.bf16.mxu0 0
        %1519 = vmatpush1.bf16.msra.mxu0 0
        %1520 = vmatprep.subr.bf16.mxu0 0
        %1521 = vmatpush1.bf16.msra.mxu0 0
        %1522 = vmatprep.subr.bf16.mxu0 0
        %1523 = vmatpush1.bf16.msra.mxu0 0
        %1524 = vmatprep.subr.bf16.mxu0 0
        %1525 = vmatpush1.bf16.msra.mxu0 0
        %1526 = vmatprep.subr.bf16.mxu0 0
        %1527 = vmatpush1.bf16.msra.mxu0 0
        %1528 = vmatprep.mubr.bf16.mxu0 0
        %1529 = vmatmul.mubr.bf16.gmra.mrb[0].mxu0 %v1488
        %v1530 = vpop.f32.mrb[0].mxu0
        %v1531 = vadd.f32 0.0, %v1530
        %v1532 = vpop.f32.mrb[0].mxu0
        %v1533 = vpop.f32.mrb[0].mxu0
        %v1534 = vadd.f32 0.0, %v1533
        %v1535 = vpop.f32.mrb[0].mxu0
        %1536 = vmatprep.mubr.bf16.mxu0 0
        %1537 = vmatmul.mubr.bf16.gmra.mrb[0].mxu0 %v1491
        %v1538 = vpop.f32.mrb[0].mxu0
        %v1539 = vadd.f32 0.0, %v1538
        %v1540 = vpop.f32.mrb[0].mxu0
        %v1541 = vpop.f32.mrb[0].mxu0
        %v1542 = vpop.f32.mrb[0].mxu0
        %1543 = vdwg.mxu0
        %1547 = vrot.lane.b32.xlu0 %v1407, 8
        %v1548 = vpop.permute.xlu0 %1547
        %1549 = vrot.lane.b32.xlu0 %v1410, 8
        %v1550 = vpop.permute.xlu0 %1549
        %1551 = vrot.lane.b32.xlu0 %v1415, 8
        %v1552 = vpop.permute.xlu0 %1551
        %1559 = vrot.lane.b32.xlu0 %v1469, 16
        %v1560 = vpop.permute.xlu0 %1559
        %1561 = vrot.lane.b32.xlu0 %v1472, 16
        %v1562 = vpop.permute.xlu0 %1561
        %1563 = vrot.lane.b32.xlu0 %v1477, 16
        %v1564 = vpop.permute.xlu0 %1563
        %1571 = vrot.lane.b32.xlu0 %v1531, 24
        %v1572 = vpop.permute.xlu0 %1571
        %1573 = vrot.lane.b32.xlu0 %v1534, 24
        %v1574 = vpop.permute.xlu0 %1573
        %1575 = vrot.lane.b32.xlu0 %v1539, 24
        %v1576 = vpop.permute.xlu0 %1575
        %v1580 = vsel %vm878, %v1345, %v1548
        %v1581 = vsel %vm878, %v1348, %v1550
        %v1582 = vsel %vm878, %v1353, %v1552
        %vm1583 = vcmask 130048
        %v1584 = vsel %vm1583, %v1580, %v1560
        %v1585 = vsel %vm1583, %v1581, %v1562
        %v1586 = vsel %vm1583, %v1582, %v1564
        %v1587 = vsel %vm1154, %v1584, %v1572
        %v1588 = vsel %vm1154, %v1585, %v1574
        %v1589 = vsel %vm1154, %v1586, %v1576
        %v1590 = vpack.c.bf16 %v1588, %v1587
        %v1591 = vpack.c.bf16 %v1589, %v1589
        %v1592 = vld [vmem:[%s7] sm:$0xf]
        %v1593 = vld [vmem:[%s7 + $0x4] sm:$0xf]
        %v1594 = vld [vmem:[%s7 + $0x8] sm:$0xf]
        %v1595 = vld [vmem:[%s7 + $0xc] sm:$0xf]
        %v1596 = vld [vmem:[%s8] sm:$0x1]
        %v1598 = vlaneseq
        %v1599 = vshrl.u32 %v1598, 7
        %v1600 = vsub.s32 0, %v1599
        %v1601 = vrot.slane %v1596, %v1600
        %v1607 = vunpack.c.l.b16 %v1592
        %v1608 = vunpack.c.l.b16 %v1593
        %v1609 = vunpack.c.l.b16 %v1594
        %v1610 = vunpack.c.l.b16 %v1595
        %v1611 = vpack.c.b16 %v1608, %v1607
        %v1612 = vpack.c.b16 %v1610, %v1609
        %v1616 = vsel %vm696, %v1590, 0
        %v1619 = vsel %vm696, %v1591, 0
        %1621 = vmatprep.subr.bf16.mxu0 0
        %1622 = vmatpush1.bf16.msra.mxu0 %v1611
        %1623 = vmatprep.subr.bf16.mxu0 0
        %1624 = vmatpush1.bf16.msra.mxu0 %v1612
        %1625 = vmatprep.subr.bf16.mxu0 0
        %1626 = vmatpush1.bf16.msra.mxu0 0
        %1627 = vmatprep.subr.bf16.mxu0 0
        %1628 = vmatpush1.bf16.msra.mxu0 0
        %1629 = vmatprep.subr.bf16.mxu0 0
        %1630 = vmatpush1.bf16.msra.mxu0 0
        %1631 = vmatprep.subr.bf16.mxu0 0
        %1632 = vmatpush1.bf16.msra.mxu0 0
        %1633 = vmatprep.subr.bf16.mxu0 0
        %1634 = vmatpush1.bf16.msra.mxu0 0
        %1635 = vmatprep.subr.bf16.mxu0 0
        %1636 = vmatpush1.bf16.msra.mxu0 0
        %1637 = vmatprep.subr.bf16.mxu0 0
        %1638 = vmatpush1.bf16.msra.mxu0 0
        %1639 = vmatprep.subr.bf16.mxu0 0
        %1640 = vmatpush1.bf16.msra.mxu0 0
        %1641 = vmatprep.subr.bf16.mxu0 0
        %1642 = vmatpush1.bf16.msra.mxu0 0
        %1643 = vmatprep.subr.bf16.mxu0 0
        %1644 = vmatpush1.bf16.msra.mxu0 0
        %1645 = vmatprep.subr.bf16.mxu0 0
        %1646 = vmatpush1.bf16.msra.mxu0 0
        %1647 = vmatprep.subr.bf16.mxu0 0
        %1648 = vmatpush1.bf16.msra.mxu0 0
        %1649 = vmatprep.subr.bf16.mxu0 0
        %1650 = vmatpush1.bf16.msra.mxu0 0
        %1651 = vmatprep.subr.bf16.mxu0 0
        %1652 = vmatpush1.bf16.msra.mxu0 0
        %1653 = vmatprep.mubr.bf16.mxu0 0
        %1654 = vmatmul.mubr.bf16.gmra.mrb[0].mxu0 %v1616
        %v1655 = vpop.f32.mrb[0].mxu0
        %v1656 = vadd.f32 %v1601, %v1655
        %v1657 = vpop.f32.mrb[0].mxu0
        %v1658 = vpop.f32.mrb[0].mxu0
        %v1659 = vadd.f32 %v1601, %v1658
        %v1660 = vpop.f32.mrb[0].mxu0
        %1661 = vmatprep.mubr.bf16.mxu0 0
        %1662 = vmatmul.mubr.bf16.gmra.mrb[0].mxu0 %v1619
        %v1663 = vpop.f32.mrb[0].mxu0
        %v1664 = vadd.f32 %v1601, %v1663
        %v1665 = vpop.f32.mrb[0].mxu0
        %v1666 = vpop.f32.mrb[0].mxu0
        %v1667 = vpop.f32.mrb[0].mxu0
        %1668 = vdwg.mxu0
        %v1669 = vadd.f32 %v681, %v1656
        %v1670 = vadd.f32 %v684, %v1659
        %v1671 = vadd.f32 %v689, %v1664
        %v1672 = vld [vmem:[%s9] sm:$0x1]
        %v1673 = vld [vmem:[%s10] sm:$0x1]
        %v1674 = vsel %vm696, %v1669, 0.0
        %1675 = vadd.xlane.f32.xlu0 %v1674
        %v1676 = vpop.xlane.xlu0 %1675
        %v1677 = vsel %vm696, %v1670, 0.0
        %1678 = vadd.xlane.f32.xlu0 %v1677
        %v1679 = vpop.xlane.xlu0 %1678
        %v1680 = vsel %vm696, %v1671, 0.0
        %1681 = vadd.xlane.f32.xlu0 %v1680
        %v1682 = vpop.xlane.xlu0 %1681
        %v1683 = vmul.f32 %v1676, %v706
        %v1684 = vmul.f32 %v1679, %v706
        %v1685 = vmul.f32 %v1682, %v706
        %v1686 = vsub.f32 %v1669, %v1683
        %v1687 = vsub.f32 %v1670, %v1684
        %v1688 = vsub.f32 %v1671, %v1685
        %v1689 = vmul.f32 %v1686, %v1686
        %v1690 = vmul.f32 %v1687, %v1687
        %v1691 = vmul.f32 %v1688, %v1688
        %v1692 = vsel %vm696, %v1689, 0.0
        %1693 = vadd.xlane.f32.xlu0 %v1692
        %v1694 = vpop.xlane.xlu0 %1693
        %v1695 = vsel %vm696, %v1690, 0.0
        %1696 = vadd.xlane.f32.xlu0 %v1695
        %v1697 = vpop.xlane.xlu0 %1696
        %v1698 = vsel %vm696, %v1691, 0.0
        %1699 = vadd.xlane.f32.xlu0 %v1698
        %v1700 = vpop.xlane.xlu0 %1699
        %v1701 = vmul.f32 %v1694, %v706
        %v1702 = vmul.f32 %v1697, %v706
        %v1703 = vmul.f32 %v1700, %v706
        %v1704 = vadd.f32 %v1701, 1e-05
        %v1705 = vadd.f32 %v1702, 1e-05
        %v1706 = vadd.f32 %v1703, 1e-05
        %v1707 = vrsqrt.pop %v1704
        %v1708 = vrsqrt.pop %v1705
        %v1709 = vrsqrt.pop %v1706
        %v1710 = vmul.f32 %v1686, %v1707
        %v1711 = vmul.f32 %v1687, %v1708
        %v1712 = vmul.f32 %v1688, %v1709
        %v1714 = vlaneseq
        %v1715 = vshrl.u32 %v1714, 7
        %v1716 = vsub.s32 0, %v1715
        %v1717 = vrot.slane %v1672, %v1716
        %v1719 = vmul.f32 %v1710, %v1717
        %v1720 = vmul.f32 %v1711, %v1717
        %v1721 = vmul.f32 %v1712, %v1717
        %v1723 = vlaneseq
        %v1724 = vshrl.u32 %v1723, 7
        %v1725 = vsub.s32 0, %v1724
        %v1726 = vrot.slane %v1673, %v1725
        %v1728 = vadd.f32 %v1719, %v1726
        %v1729 = vadd.f32 %v1720, %v1726
        %v1730 = vadd.f32 %v1721, %v1726
        %v1731 = vpack.c.bf16 %v1729, %v1728
        %v1732 = vpack.c.bf16 %v1730, %v1730
        %v1733 = vld [vmem:[%s11] sm:$0xf]
        %v1734 = vld [vmem:[%s11 + $0x4] sm:$0xf]
        %v1735 = vld [vmem:[%s11 + $0x8] sm:$0xf]
        %v1736 = vld [vmem:[%s11 + $0xc] sm:$0xf]
        %v1737 = vld [vmem:[%s12] sm:$0x1]
        %v1739 = vlaneseq
        %v1740 = vshrl.u32 %v1739, 7
        %v1741 = vsub.s32 0, %v1740
        %v1742 = vrot.slane %v1737, %v1741
        %v1748 = vunpack.c.l.b16 %v1733
        %v1749 = vunpack.c.l.b16 %v1734
        %v1750 = vunpack.c.l.b16 %v1735
        %v1751 = vunpack.c.l.b16 %v1736
        %v1752 = vpack.c.b16 %v1749, %v1748
        %v1753 = vpack.c.b16 %v1751, %v1750
        %v1757 = vsel %vm696, %v1731, 0
        %v1760 = vsel %vm696, %v1732, 0
        %1762 = vmatprep.subr.bf16.mxu0 0
        %1763 = vmatpush1.bf16.msra.mxu0 %v1752
        %1764 = vmatprep.subr.bf16.mxu0 0
        %1765 = vmatpush1.bf16.msra.mxu0 %v1753
        %1766 = vmatprep.subr.bf16.mxu0 0
        %1767 = vmatpush1.bf16.msra.mxu0 0
        %1768 = vmatprep.subr.bf16.mxu0 0
        %1769 = vmatpush1.bf16.msra.mxu0 0
        %1770 = vmatprep.subr.bf16.mxu0 0
        %1771 = vmatpush1.bf16.msra.mxu0 0
        %1772 = vmatprep.subr.bf16.mxu0 0
        %1773 = vmatpush1.bf16.msra.mxu0 0
        %1774 = vmatprep.subr.bf16.mxu0 0
        %1775 = vmatpush1.bf16.msra.mxu0 0
        %1776 = vmatprep.subr.bf16.mxu0 0
        %1777 = vmatpush1.bf16.msra.mxu0 0
        %1778 = vmatprep.subr.bf16.mxu0 0
        %1779 = vmatpush1.bf16.msra.mxu0 0
        %1780 = vmatprep.subr.bf16.mxu0 0
        %1781 = vmatpush1.bf16.msra.mxu0 0
        %1782 = vmatprep.subr.bf16.mxu0 0
        %1783 = vmatpush1.bf16.msra.mxu0 0
        %1784 = vmatprep.subr.bf16.mxu0 0
        %1785 = vmatpush1.bf16.msra.mxu0 0
        %1786 = vmatprep.subr.bf16.mxu0 0
        %1787 = vmatpush1.bf16.msra.mxu0 0
        %1788 = vmatprep.subr.bf16.mxu0 0
        %1789 = vmatpush1.bf16.msra.mxu0 0
        %1790 = vmatprep.subr.bf16.mxu0 0
        %1791 = vmatpush1.bf16.msra.mxu0 0
        %1792 = vmatprep.subr.bf16.mxu0 0
        %1793 = vmatpush1.bf16.msra.mxu0 0
        %1794 = vmatprep.mubr.bf16.mxu0 0
        %1795 = vmatmul.mubr.bf16.gmra.mrb[0].mxu0 %v1757
        %v1796 = vpop.f32.mrb[0].mxu0
        %v1797 = vadd.f32 %v1742, %v1796
        %v1798 = vpop.f32.mrb[0].mxu0
        %v1799 = vpop.f32.mrb[0].mxu0
        %v1800 = vadd.f32 %v1742, %v1799
        %v1801 = vpop.f32.mrb[0].mxu0
        %1802 = vmatprep.mubr.bf16.mxu0 0
        %1803 = vmatmul.mubr.bf16.gmra.mrb[0].mxu0 %v1760
        %v1804 = vpop.f32.mrb[0].mxu0
        %v1805 = vadd.f32 %v1742, %v1804
        %v1806 = vpop.f32.mrb[0].mxu0
        %v1807 = vpop.f32.mrb[0].mxu0
        %v1808 = vpop.f32.mrb[0].mxu0
        %1809 = vdwg.mxu0
        %v1810 = vmul.f32 %v1797, %v1797
        %v1811 = vmul.f32 %v1800, %v1800
        %v1812 = vmul.f32 %v1805, %v1805
        %v1813 = vmul.f32 %v1797, %v1810
        %v1814 = vmul.f32 %v1800, %v1811
        %v1815 = vmul.f32 %v1805, %v1812
        %v1816 = vmul.f32 %v1813, 0.044715
        %v1817 = vmul.f32 %v1814, 0.044715
        %v1818 = vmul.f32 %v1815, 0.044715
        %v1819 = vadd.f32 %v1797, %v1816
        %v1820 = vadd.f32 %v1800, %v1817
        %v1821 = vadd.f32 %v1805, %v1818
        %v1822 = vmul.f32 %v1819, 0.7978846
        %v1823 = vmul.f32 %v1820, 0.7978846
        %v1824 = vmul.f32 %v1821, 0.7978846
        %v1825 = vtanh.pop %v1822
        %v1826 = vtanh.pop %v1823
        %v1827 = vtanh.pop %v1824
        %v1828 = vadd.f32 %v1825, 1.0
        %v1829 = vadd.f32 %v1826, 1.0
        %v1830 = vadd.f32 %v1827, 1.0
        %v1831 = vmul.f32 %v1828, 0.5
        %v1832 = vmul.f32 %v1829, 0.5
        %v1833 = vmul.f32 %v1830, 0.5
        %v1834 = vmul.f32 %v1797, %v1831
        %v1835 = vmul.f32 %v1800, %v1832
        %v1836 = vmul.f32 %v1805, %v1833
        %v1837 = vpack.c.bf16 %v1835, %v1834
        %v1838 = vpack.c.bf16 %v1836, %v1836
        %v1839 = vld [vmem:[%s13] sm:$0xf]
        %v1840 = vld [vmem:[%s13 + $0x4] sm:$0xf]
        %v1841 = vld [vmem:[%s13 + $0x8] sm:$0xf]
        %v1842 = vld [vmem:[%s13 + $0xc] sm:$0xf]
        %v1843 = vld [vmem:[%s13 + $0x10] sm:$0xf]
        %v1844 = vld [vmem:[%s13 + $0x14] sm:$0xf]
        %v1845 = vld [vmem:[%s13 + $0x18] sm:$0xf]
        %v1846 = vld [vmem:[%s13 + $0x1c] sm:$0xf]
        %v1847 = vld [vmem:[%s13 + $0x20] sm:$0xf]
        %v1848 = vld [vmem:[%s13 + $0x24] sm:$0xf]
        %v1849 = vld [vmem:[%s13 + $0x28] sm:$0xf]
        %v1850 = vld [vmem:[%s13 + $0x2c] sm:$0xf]
        %v1851 = vld [vmem:[%s13 + $0x30] sm:$0xf]
        %v1852 = vld [vmem:[%s13 + $0x34] sm:$0xf]
        %v1853 = vld [vmem:[%s13 + $0x38] sm:$0xf]
        %v1854 = vld [vmem:[%s13 + $0x3c] sm:$0xf]
        %v1855 = vld [vmem:[%s14] sm:$0x1]
        %v1857 = vlaneseq
        %v1858 = vshrl.u32 %v1857, 7
        %v1859 = vsub.s32 0, %v1858
        %v1860 = vrot.slane %v1855, %v1859
        %v1878 = vunpack.c.l.b16 %v1839
        %v1879 = vunpack.c.l.b16 %v1840
        %v1880 = vunpack.c.l.b16 %v1841
        %v1881 = vunpack.c.l.b16 %v1842
        %v1882 = vunpack.c.l.b16 %v1843
        %v1883 = vunpack.c.l.b16 %v1844
        %v1884 = vunpack.c.l.b16 %v1845
        %v1885 = vunpack.c.l.b16 %v1846
        %v1886 = vunpack.c.l.b16 %v1847
        %v1887 = vunpack.c.l.b16 %v1848
        %v1888 = vunpack.c.l.b16 %v1849
        %v1889 = vunpack.c.l.b16 %v1850
        %v1890 = vunpack.c.l.b16 %v1851
        %v1891 = vunpack.c.l.b16 %v1852
        %v1892 = vunpack.c.l.b16 %v1853
        %v1893 = vunpack.c.l.b16 %v1854
        %v1894 = vpack.c.b16 %v1879, %v1878
        %v1895 = vpack.c.b16 %v1881, %v1880
        %v1896 = vpack.c.b16 %v1883, %v1882
        %v1897 = vpack.c.b16 %v1885, %v1884
        %v1898 = vpack.c.b16 %v1887, %v1886
        %v1899 = vpack.c.b16 %v1889, %v1888
        %v1900 = vpack.c.b16 %v1891, %v1890
        %v1901 = vpack.c.b16 %v1893, %v1892
        %1910 = vmatprep.subr.bf16.mxu0 0
        %1911 = vmatpush1.bf16.msra.mxu0 %v1894
        %1912 = vmatprep.subr.bf16.mxu0 0
        %1913 = vmatpush1.bf16.msra.mxu0 %v1895
        %1914 = vmatprep.subr.bf16.mxu0 0
        %1915 = vmatpush1.bf16.msra.mxu0 %v1896
        %1916 = vmatprep.subr.bf16.mxu0 0
        %1917 = vmatpush1.bf16.msra.mxu0 %v1897
        %1918 = vmatprep.subr.bf16.mxu0 0
        %1919 = vmatpush1.bf16.msra.mxu0 %v1898
        %1920 = vmatprep.subr.bf16.mxu0 0
        %1921 = vmatpush1.bf16.msra.mxu0 %v1899
        %1922 = vmatprep.subr.bf16.mxu0 0
        %1923 = vmatpush1.bf16.msra.mxu0 %v1900
        %1924 = vmatprep.subr.bf16.mxu0 0
        %1925 = vmatpush1.bf16.msra.mxu0 %v1901
        %1926 = vmatprep.subr.bf16.mxu0 0
        %1927 = vmatpush1.bf16.msra.mxu0 0
        %1928 = vmatprep.subr.bf16.mxu0 0
        %1929 = vmatpush1.bf16.msra.mxu0 0
        %1930 = vmatprep.subr.bf16.mxu0 0
        %1931 = vmatpush1.bf16.msra.mxu0 0
        %1932 = vmatprep.subr.bf16.mxu0 0
        %1933 = vmatpush1.bf16.msra.mxu0 0
        %1934 = vmatprep.subr.bf16.mxu0 0
        %1935 = vmatpush1.bf16.msra.mxu0 0
        %1936 = vmatprep.subr.bf16.mxu0 0
        %1937 = vmatpush1.bf16.msra.mxu0 0
        %1938 = vmatprep.subr.bf16.mxu0 0
        %1939 = vmatpush1.bf16.msra.mxu0 0
        %1940 = vmatprep.subr.bf16.mxu0 0
        %1941 = vmatpush1.bf16.msra.mxu0 0
        %1942 = vmatprep.mubr.bf16.mxu0 0
        %1943 = vmatmul.mubr.bf16.gmra.mrb[0].mxu0 %v1837
        %v1944 = vpop.f32.mrb[0].mxu0
        %v1945 = vadd.f32 %v1860, %v1944
        %v1946 = vpop.f32.mrb[0].mxu0
        %v1947 = vpop.f32.mrb[0].mxu0
        %v1948 = vpop.f32.mrb[0].mxu0
        %1949 = vmatprep.mubr.bf16.mxu0 0
        %1950 = vmatmul.mubr.bf16.gmra.mrb[0].mxu0 %v1838
        %v1951 = vpop.f32.mrb[0].mxu0
        %v1952 = vpop.f32.mrb[0].mxu0
        %v1953 = vpop.f32.mrb[0].mxu0
        %v1954 = vpop.f32.mrb[0].mxu0
        %1955 = vdwg.mxu0
        %v1956 = vadd.f32 %v1669, %v1945
        %v1957 = vld [vmem:[%s15] sm:$0x1]
        %v1958 = vld [vmem:[%s16] sm:$0x1]
        %vm1959 = vcmask 253952
        %v1960 = vsel %vm1959, %v1956, 0.0
        %1961 = vadd.xlane.f32.xlu0 %v1960
        %v1962 = vpop.xlane.xlu0 %1961
        %v1963 = vmul.f32 %v1962, %v706
        %v1964 = vsub.f32 %v1956, %v1963
        %v1965 = vmul.f32 %v1964, %v1964
        %v1966 = vsel %vm1959, %v1965, 0.0
        %1967 = vadd.xlane.f32.xlu0 %v1966
        %v1968 = vpop.xlane.xlu0 %1967
        %v1969 = vmul.f32 %v1968, %v706
        %v1970 = vadd.f32 %v1969, 1e-05
        %v1971 = vrsqrt.pop %v1970
        %v1972 = vmul.f32 %v1964, %v1971
        %v1973 = vmul.f32 %v1972, %v1957
        %v1974 = vadd.f32 %v1973, %v1958
        %v1975 = vpack.c.bf16 %v1974, %v1974
        %v1976 = vld [vmem:[%s17] sm:$0xf]
        %v1977 = vld [vmem:[%s17 + $0x4] sm:$0xf]
        %v1978 = vld [vmem:[%s17 + $0x8] sm:$0xf]
        %v1979 = vld [vmem:[%s17 + $0xc] sm:$0xf]
        %v1980 = vld [vmem:[%s18] sm:$0x1]
        %v1985 = vunpack.c.l.b16 %v1976
        %v1986 = vunpack.c.l.b16 %v1977
        %v1987 = vunpack.c.l.b16 %v1978
        %v1988 = vunpack.c.l.b16 %v1979
        %v1989 = vpack.c.b16 %v1986, %v1985
        %v1990 = vpack.c.b16 %v1988, %v1987
        %v1994 = vsel %vm696, %v1975, 0
        %1996 = vmatprep.subr.bf16.mxu0 0
        %1997 = vmatpush1.bf16.msra.mxu0 %v1989
        %1998 = vmatprep.subr.bf16.mxu0 0
        %1999 = vmatpush1.bf16.msra.mxu0 %v1990
        %2000 = vmatprep.subr.bf16.mxu0 0
        %2001 = vmatpush1.bf16.msra.mxu0 0
        %2002 = vmatprep.subr.bf16.mxu0 0
        %2003 = vmatpush1.bf16.msra.mxu0 0
        %2004 = vmatprep.subr.bf16.mxu0 0
        %2005 = vmatpush1.bf16.msra.mxu0 0
        %2006 = vmatprep.subr.bf16.mxu0 0
        %2007 = vmatpush1.bf16.msra.mxu0 0
        %2008 = vmatprep.subr.bf16.mxu0 0
        %2009 = vmatpush1.bf16.msra.mxu0 0
        %2010 = vmatprep.subr.bf16.mxu0 0
        %2011 = vmatpush1.bf16.msra.mxu0 0
        %2012 = vmatprep.subr.bf16.mxu0 0
        %2013 = vmatpush1.bf16.msra.mxu0 0
        %2014 = vmatprep.subr.bf16.mxu0 0
        %2015 = vmatpush1.bf16.msra.mxu0 0
        %2016 = vmatprep.subr.bf16.mxu0 0
        %2017 = vmatpush1.bf16.msra.mxu0 0
        %2018 = vmatprep.subr.bf16.mxu0 0
        %2019 = vmatpush1.bf16.msra.mxu0 0
        %2020 = vmatprep.subr.bf16.mxu0 0
        %2021 = vmatpush1.bf16.msra.mxu0 0
        %2022 = vmatprep.subr.bf16.mxu0 0
        %2023 = vmatpush1.bf16.msra.mxu0 0
        %2024 = vmatprep.subr.bf16.mxu0 0
        %2025 = vmatpush1.bf16.msra.mxu0 0
        %2026 = vmatprep.subr.bf16.mxu0 0
        %2027 = vmatpush1.bf16.msra.mxu0 0
        %2028 = vmatprep.mubr.bf16.mxu0 0
        %2029 = vmatmul.mubr.bf16.gmra.mrb[0].mxu0 %v1994
        %v2030 = vpop.f32.mrb[0].mxu0
        %v2031 = vadd.f32 %v1980, %v2030
        %v2032 = vpop.f32.mrb[0].mxu0
        %v2033 = vpop.f32.mrb[0].mxu0
        %v2034 = vpop.f32.mrb[0].mxu0
        %2035 = vdwg.mxu0
        %2036 = vst [vmem:[%s594] sm:$0x1] %v2031
        %s2037 = sand.u32 %s445, 1
        %s2038 = scalar_lea.sflag [#allocation3], %s2037
        %s2039 = sand.u32 %s445, 1
        %s2040 = scalar_lea.vmem [#allocation2], %s2039
        // Predicated region
        $region97: #{vit_forward.1} parent=95 // pred_check
          %p2041 = pneg %p455
        $region98: #{vit_forward.1} parent=95 // pred_check_branch
          %2043 = sbr.rel (%p2041) target = $region100
        $region99: #{vit_forward.1} parent=95 // pred_region
          %s2045 = ssub.s32 16, 16
          %2046 = vsyncadd %s2038, %s2045
          %s2047 = smul.addr %s33, 16
          %s2048 = scalar_lea.hbm %s19, %s2047
          %s2050 = sshll.u32 %s2040, 4
          %s2051 = int_to_ptr.vmem [resolvable:$true] %s2050
          %2053 = dma.vmem_to_hbm [thread:$0]  %s2051, 16, %s2048, %s2038
        $region100: #{vit_forward.1} parent=95 // pred_fallthru
          _
      $region96: #{vit_forward.1} parent=5 // pred_fallthru
        _
      %p2054 = scmp.le.s32.totalorder 2, %s28
      // Predicated region
      $region101: #{vit_forward.1} parent=5 // pred_check
        %p2055 = pneg %p2054
      $region102: #{vit_forward.1} parent=5 // pred_check_branch
        %2057 = sbr.rel (%p2055) target = $region104
      $region103: #{vit_forward.1} parent=5 // pred_region
        %s2058 = ssub.s32 %s28, 2
        // Predicated region
        $region105: #{vit_forward.1} parent=103 // pred_check
          %p2059 = pneg %p461
        $region106: #{vit_forward.1} parent=103 // pred_check_branch
          %2061 = sbr.rel (%p2059) target = $region108
        $region107: #{vit_forward.1} parent=103 // pred_region
          %s2062 = sand.u32 %s446, 1
          %s2063 = scalar_lea.sflag [#allocation3], %s2062
          %s2064 = sand.u32 %s446, 1
          %s2065 = scalar_lea.vmem [#allocation2], %s2064
          %2066 = dma.done %s2063, 16
        $region108: #{vit_forward.1} parent=103 // pred_fallthru
          _
      $region104: #{vit_forward.1} parent=5 // pred_fallthru
        _
    $region6: #{vit_forward.1} parent=1 // loop_footer
      %s32 = sadd.s32 1, %s28
    $region7: #{vit_forward.1} parent=1 // loop_footer_branch
      %27 = sbr.rel target = $region3
    $region8: #{vit_forward.1} parent=1 // loop_exit
      _
    %2067 = vsyncpa [#allocation3], 1
    %s2068 = scalar_lea.sflag [#allocation3], 1
    %2069 = vsyncpa %s2068, 1

</llo_original>
